<compile_context>
chip_gen: v5e
topology: v5e:2x2
jax: 0.10.0
libtpu: 0.0.40
codegen_flags: <defaults>
</compile_context>

<pallas_src>
import math

import jax
import jax.numpy as jnp
from jax import lax
from jax.experimental import pallas as pl
from jax.experimental.pallas import tpu as pltpu

# ------------------------- configuration -------------------------
IMG = 16
PATCH = 8
IN_CHANS = 3
EMBED = 32
DEPTH = 2
HEADS = 4
MLP_RATIO = 4.0

HEAD_DIM = EMBED // HEADS
HIDDEN = int(EMBED * MLP_RATIO)          # 128 — already lane aligned
NUM_PATCHES = (IMG // PATCH) * (IMG // PATCH)
N_TOK = NUM_PATCHES + 1
SCALE = HEAD_DIM ** (-0.5)
LN_EPS = 1e-5

E_PAD = 128                               # lane-dense padded embedding width
CPP = IN_CHANS * PATCH * PATCH            # flattened patch length

_REFS_PER_BLOCK = 13                      # weight refs per transformer block


# ------------------------- in-kernel math helpers -------------------------
def _erf_approx(x):
    # Abramowitz & Stegun 7.1.26 (|err| < 1.5e-7): exact-GELU semantics in f32.
    a1, a2, a3, a4, a5 = 0.254829592, -0.284496736, 1.421413741, -1.453152027, 1.061405429
    p = 0.3275911
    s = jnp.where(x >= 0, jnp.float32(1.0), jnp.float32(-1.0))
    ax = jnp.abs(x)
    # EUP reciprocal (free slot) instead of a VALU divide.
    t = pl.reciprocal(1.0 + p * ax, approx=True)
    poly = ((((a5 * t + a4) * t + a3) * t + a2) * t + a1) * t
    return s * (1.0 - poly * jnp.exp(-ax * ax))


def _gelu_exact(x):
    # nn.GELU default is the exact (erf) GELU.
    return 0.5 * x * (1.0 + _erf_approx(x * 0.7071067811865476))


def _layernorm_pad(x, w, b):
    # x: (R, E_PAD) with lanes [EMBED:] == 0; statistics over the first EMBED lanes.
    mu = jnp.sum(x, axis=-1, keepdims=True) * (1.0 / EMBED)
    xc = x - mu
    # sum(xc^2) over all lanes = sum over real lanes + (E_PAD-EMBED)*mu^2.
    var = (jnp.sum(xc * xc, axis=-1, keepdims=True)
           - (E_PAD - EMBED) * mu * mu) * (1.0 / EMBED)
    # zero-padded w/b keep the pad lanes at exactly 0.
    return xc * lax.rsqrt(var + LN_EPS) * w + b


def _dot_t(a, b):
    # (n, d) x (m, d) -> (n, m): a @ b.T without materializing the transpose.
    return lax.dot_general(a, b, (((1,), (1,)), ((), ())),
                           preferred_element_type=jnp.float32)


# ------------------------- fused Pallas kernel -------------------------
def fused_vit_kernel(patches_ref, pw_ref, tok_ref, mask_ref, *rest):
    """Entire forward_features for the whole (tiny) batch in one invocation.

    rest = DEPTH blocks x 13 weight refs, then the output ref.
    The activation lives as a traced (B*N_TOK, E_PAD) f32 value (vreg/VMEM managed
    by the compiler); o_ref is written exactly once at the end.
    """
    blocks = tuple(
        rest[i * _REFS_PER_BLOCK:(i + 1) * _REFS_PER_BLOCK] for i in range(DEPTH)
    )
    o_ref = rest[DEPTH * _REFS_PER_BLOCK]

    # ---- patch embed + token assembly (cls + abs pos), one lane-dense matmul ----
    # patches has a zero row at every cls position, so the matmul yields 0 there;
    # tok_ref carries cls_token+pos[0] on cls rows and patch_bias+pos[1:] elsewhere.
    x = jnp.dot(patches_ref[...].astype(jnp.bfloat16), pw_ref[...],
                preferred_element_type=jnp.float32) + tok_ref[...]        # (BN, E_PAD) f32
    # pos_drop is identity (drop_rate = 0).

    mask = mask_ref[...]                                                  # (BN, BN) f32

    for (n1w, n1b, wqkv, qb, vb, wp, pjb,
         n2w, n2b, f1w, f1b, f2w, f2b) in blocks:
        # ---------------- attention: x += proj(softmax(q k^T * scale) v) ----------------
        h = _layernorm_pad(x, n1w[...], n1b[...])                         # (BN, E_PAD) f32
        qkv = jnp.dot(h.astype(jnp.bfloat16), wqkv[...],
                      preferred_element_type=jnp.float32)                 # (BN, 3*EMBED) f32
        q = (qkv[:, 0:EMBED] + qb[...]) * SCALE
        k = qkv[:, EMBED:2 * EMBED]          # k has no bias in the module
        v = qkv[:, 2 * EMBED:3 * EMBED] + vb[...]

        # TODO(synk): at production sizes batch the scores/context matmuls over
        # (B*HEADS) in one einsum; here head_dim=8 so the 4-step static loop is tiny.
        ctx_heads = []
        for hh in range(HEADS):
            lo, hi = hh * HEAD_DIM, (hh + 1) * HEAD_DIM
            s = _dot_t(q[:, lo:hi].astype(jnp.bfloat16),
                       k[:, lo:hi].astype(jnp.bfloat16)) + mask           # (BN, BN) f32
            s = s - jnp.max(s, axis=-1, keepdims=True)
            e = jnp.exp(s)
            p = e * pl.reciprocal(jnp.sum(e, axis=-1, keepdims=True), approx=True)
            ctx_heads.append(jnp.dot(p.astype(jnp.bfloat16),
                                     v[:, lo:hi].astype(jnp.bfloat16),
                                     preferred_element_type=jnp.float32))  # (BN, hd)
        # Head-sum folded into a single lane-dense contraction: concat(heads) @ Wproj.
        ctx = jnp.concatenate(ctx_heads, axis=-1)                          # (BN, EMBED)
        x = x + jnp.dot(ctx.astype(jnp.bfloat16), wp[...],
                        preferred_element_type=jnp.float32) + pjb[...]

        # ---------------- MLP: x += fc2(gelu(fc1(norm2(x)))) ----------------
        h2 = _layernorm_pad(x, n2w[...], n2b[...])
        h2 = jnp.dot(h2.astype(jnp.bfloat16), f1w[...],
                     preferred_element_type=jnp.float32) + f1b[...]        # (BN, HIDDEN)
        h2 = _gelu_exact(h2)                                               # f32 elementwise
        h2 = jnp.dot(h2.astype(jnp.bfloat16), f2w[...],
                     preferred_element_type=jnp.float32) + f2b[...]        # (BN, E_PAD)
        x = x + h2

    o_ref[...] = x                                                         # single 128-lane store


# ------------------------- one-time parameter preprocessing -------------------------
def _pad_cols(a):
    return jnp.pad(a, ((0, 0), (0, E_PAD - a.shape[-1])))


def _pad_rows(a):
    return jnp.pad(a, ((0, E_PAD - a.shape[0]), (0, 0)))


def preprocess_params(params):
    """Hoisted parameter prep (transposes, padding, bf16 casts): done once."""
    patch_w = _pad_cols(params["patch_w"].reshape(EMBED, -1).T).astype(jnp.bfloat16)  # (CPP, E_PAD)

    pos = params["pos_embed"][0]                                          # (N_TOK, EMBED)
    cls = params["cls_token"][0, 0]                                       # (EMBED,)
    # Additive term per token row: cls rows get cls+pos[0]; patch rows get patch_b+pos[1:].
    tok = jnp.concatenate(
        [(cls + pos[0])[None, :], pos[1:] + params["patch_b"][None, :]], axis=0)
    tok = _pad_cols(tok)                                                  # (N_TOK, E_PAD) f32

    blocks = []
    for blk in params["blocks"]:
        qkv_w = blk["qkv_w"]                                              # (3E, E)
        blocks.append((
            _pad_cols(blk["norm1_w"][None, :]), _pad_cols(blk["norm1_b"][None, :]),
            _pad_rows(qkv_w.T).astype(jnp.bfloat16),                      # (E_PAD, 3E)
            blk["q_bias"].reshape(1, EMBED),
            blk["v_bias"].reshape(1, EMBED),
            _pad_cols(blk["proj_w"].T).astype(jnp.bfloat16),              # (E, E_PAD)
            _pad_cols(blk["proj_b"][None, :]),
            _pad_cols(blk["norm2_w"][None, :]), _pad_cols(blk["norm2_b"][None, :]),
            _pad_rows(blk["fc1_w"].T).astype(jnp.bfloat16),               # (E_PAD, HIDDEN)
            blk["fc1_b"].reshape(1, HIDDEN),
            _pad_cols(blk["fc2_w"].T).astype(jnp.bfloat16),               # (HIDDEN, E_PAD)
            _pad_cols(blk["fc2_b"][None, :]),
        ))
    return {"patch_w": patch_w, "tok_add": tok, "blocks": tuple(blocks)}


# ------------------------- full forward (forward_features) -------------------------
@jax.jit
def vit_forward(x_nchw, prep):
    B, C, H, W = x_nchw.shape
    ph, pw = H // PATCH, W // PATCH
    # Conv2d(kernel=stride=patch) == patch extract + matmul; flatten each patch in
    # (C, p, p) order to match the conv-weight flattening.  Layout glue, not compute.
    patches = x_nchw.reshape(B, C, ph, PATCH, pw, PATCH)
    patches = patches.transpose(0, 2, 4, 1, 3, 5).reshape(B, ph * pw, CPP)
    # Insert a zero row at every cls position so one matmul covers all token rows.
    patches = jnp.concatenate(
        [jnp.zeros((B, 1, CPP), patches.dtype), patches], axis=1).reshape(B * N_TOK, CPP)

    tok = jnp.tile(prep["tok_add"], (B, 1))                               # (B*N_TOK, E_PAD)

    # Additive mask so tokens of different images never attend to each other
    # (batch is folded into the token/sublane axis inside the kernel).
    ids = jnp.arange(B * N_TOK) // N_TOK
    attn_mask = jnp.where(ids[:, None] == ids[None, :], 0.0, -1e30).astype(jnp.float32)

    args = [patches, prep["patch_w"], tok, attn_mask]
    for blk in prep["blocks"]:
        args.extend(blk)

    # Single pallas_call: all (bf16) weights and the (B*N_TOK, 128) activation slab
    # stay VMEM-resident; the only o_ref store is the final lane-dense (128) write.
    out = pl.pallas_call(
        fused_vit_kernel,
        out_shape=jax.ShapeDtypeStruct((B * N_TOK, E_PAD), jnp.float32),
        compiler_params=pltpu.CompilerParams(vmem_limit_bytes=32 * 1024 * 1024),
    )(*args)
    return out[:, :EMBED].reshape(B, N_TOK, EMBED)


# ------------------------- parameter init (deterministic, synthetic) -------------------------
def init_params(key):
    k_conv, k_pos, k_cls, k_blocks = jax.random.split(key, 4)
    params = {
        "patch_w": 0.02 * jax.random.normal(k_conv, (EMBED, IN_CHANS, PATCH, PATCH), jnp.float32),
        "patch_b": jnp.zeros((EMBED,), jnp.float32),
        "pos_embed": 0.02 * jax.random.normal(k_pos, (1, N_TOK, EMBED), jnp.float32),
        "cls_token": 0.02 * jax.random.normal(k_cls, (1, 1, EMBED), jnp.float32),
    }
    blocks = []
    bkeys = jax.random.split(k_blocks, DEPTH)
    for i in range(DEPTH):
        kq, kp, k1, k2 = jax.random.split(bkeys[i], 4)
        rescale = 1.0 / math.sqrt(2.0 * (i + 1))  # fix_init_weight()
        blocks.append(dict(
            norm1_w=jnp.ones((EMBED,), jnp.float32),
            norm1_b=jnp.zeros((EMBED,), jnp.float32),
            qkv_w=0.02 * jax.random.normal(kq, (3 * EMBED, EMBED), jnp.float32),
            q_bias=jnp.zeros((EMBED,), jnp.float32),   # module inits these to zero
            v_bias=jnp.zeros((EMBED,), jnp.float32),
            proj_w=rescale * 0.02 * jax.random.normal(kp, (EMBED, EMBED), jnp.float32),
            proj_b=jnp.zeros((EMBED,), jnp.float32),
            norm2_w=jnp.ones((EMBED,), jnp.float32),
            norm2_b=jnp.zeros((EMBED,), jnp.float32),
            fc1_w=0.02 * jax.random.normal(k1, (HIDDEN, EMBED), jnp.float32),
            fc1_b=jnp.zeros((HIDDEN,), jnp.float32),
            fc2_w=rescale * 0.02 * jax.random.normal(k2, (EMBED, HIDDEN), jnp.float32),
            fc2_b=jnp.zeros((EMBED,), jnp.float32),
        ))
    params["blocks"] = blocks
    return params


# ------------------------- pure-JAX reference (for verification) -------------------------
def reference_forward(x_nchw, params):
    from jax.scipy.special import erf

    B, C, H, W = x_nchw.shape
    ph, pw = H // PATCH, W // PATCH
    patches = x_nchw.reshape(B, C, ph, PATCH, pw, PATCH)
    patches = patches.transpose(0, 2, 4, 1, 3, 5).reshape(B, ph * pw, -1)
    x = patches @ params["patch_w"].reshape(EMBED, -1).T + params["patch_b"]
    cls = jnp.broadcast_to(params["cls_token"], (B, 1, EMBED))
    x = jnp.concatenate([cls, x], axis=1) + params["pos_embed"]

    def ln(v, w, b):
        mu = v.mean(-1, keepdims=True)
        var = ((v - mu) ** 2).mean(-1, keepdims=True)
        return (v - mu) / jnp.sqrt(var + LN_EPS) * w + b

    for blk in params["blocks"]:
        h = ln(x, blk["norm1_w"], blk["norm1_b"])
        qkv_b = jnp.concatenate([blk["q_bias"], jnp.zeros_like(blk["v_bias"]), blk["v_bias"]])
        qkv = h @ blk["qkv_w"].T + qkv_b
        Bn, Nn, _ = h.shape
        qkv = qkv.reshape(Bn, Nn, 3, HEADS, HEAD_DIM).transpose(2, 0, 3, 1, 4)
        q, k, v = qkv[0] * SCALE, qkv[1], qkv[2]
        attn = jax.nn.softmax(q @ jnp.swapaxes(k, -2, -1), axis=-1)
        o = (attn @ v).transpose(0, 2, 1, 3).reshape(Bn, Nn, -1)
        x = x + (o @ blk["proj_w"].T + blk["proj_b"])
        h2 = ln(x, blk["norm2_w"], blk["norm2_b"])
        h2 = h2 @ blk["fc1_w"].T + blk["fc1_b"]
        h2 = 0.5 * h2 * (1.0 + erf(h2 / jnp.sqrt(2.0)))
        h2 = h2 @ blk["fc2_w"].T + blk["fc2_b"]
        x = x + h2
    return x


# ------------------------- main -------------------------
if __name__ == "__main__":
    key = jax.random.PRNGKey(0)
    kx, kp = jax.random.split(key)
    x = jax.random.normal(kx, (2, IN_CHANS, IMG, IMG), jnp.float32)
    params = init_params(kp)
    prep = preprocess_params(params)      # hoisted one-time parameter prep (incl. bf16 casts)

    out = jax.block_until_ready(vit_forward(x, prep))

    ref = reference_forward(x, params)    # pure-f32 reference
    max_err = float(jnp.max(jnp.abs(out - ref)))

    assert out.shape == (2, N_TOK, EMBED), out.shape
    # bf16 MXU operands (f32 accumulation) + approx EUP reciprocals vs f32 reference.
    assert max_err < 1e-2, f"max abs err too large: {max_err}"
    print("KERNEL_OK")
</pallas_src>

<mosaic_0001>
module attributes {stable_mosaic.version = 11 : i64} {
  func.func @fused_vit_kernel(%arg0: memref<10x192xf32, #tpu.memory_space<vmem>>, %arg1: memref<192x128xbf16, #tpu.memory_space<vmem>>, %arg2: memref<10x128xf32, #tpu.memory_space<vmem>>, %arg3: memref<10x10xf32, #tpu.memory_space<vmem>>, %arg4: memref<1x128xf32, #tpu.memory_space<vmem>>, %arg5: memref<1x128xf32, #tpu.memory_space<vmem>>, %arg6: memref<128x96xbf16, #tpu.memory_space<vmem>>, %arg7: memref<1x32xf32, #tpu.memory_space<vmem>>, %arg8: memref<1x32xf32, #tpu.memory_space<vmem>>, %arg9: memref<32x128xbf16, #tpu.memory_space<vmem>>, %arg10: memref<1x128xf32, #tpu.memory_space<vmem>>, %arg11: memref<1x128xf32, #tpu.memory_space<vmem>>, %arg12: memref<1x128xf32, #tpu.memory_space<vmem>>, %arg13: memref<128x128xbf16, #tpu.memory_space<vmem>>, %arg14: memref<1x128xf32, #tpu.memory_space<vmem>>, %arg15: memref<128x128xbf16, #tpu.memory_space<vmem>>, %arg16: memref<1x128xf32, #tpu.memory_space<vmem>>, %arg17: memref<1x128xf32, #tpu.memory_space<vmem>>, %arg18: memref<1x128xf32, #tpu.memory_space<vmem>>, %arg19: memref<128x96xbf16, #tpu.memory_space<vmem>>, %arg20: memref<1x32xf32, #tpu.memory_space<vmem>>, %arg21: memref<1x32xf32, #tpu.memory_space<vmem>>, %arg22: memref<32x128xbf16, #tpu.memory_space<vmem>>, %arg23: memref<1x128xf32, #tpu.memory_space<vmem>>, %arg24: memref<1x128xf32, #tpu.memory_space<vmem>>, %arg25: memref<1x128xf32, #tpu.memory_space<vmem>>, %arg26: memref<128x128xbf16, #tpu.memory_space<vmem>>, %arg27: memref<1x128xf32, #tpu.memory_space<vmem>>, %arg28: memref<128x128xbf16, #tpu.memory_space<vmem>>, %arg29: memref<1x128xf32, #tpu.memory_space<vmem>>, %arg30: memref<10x128xf32, #tpu.memory_space<vmem>>) attributes {dimension_semantics = [], scalar_prefetch = 0 : i64, scratch_operands = 0 : i64, tpu.core_type = #tpu.core_type<tc>} {
    %c0 = arith.constant 0 : index
    %c0_0 = arith.constant 0 : index
    %0 = vector.load %arg0[%c0, %c0_0] : memref<10x192xf32, #tpu.memory_space<vmem>>, vector<10x192xf32>
    %1 = arith.truncf %0 : vector<10x192xf32> to vector<10x192xbf16>
    %c0_1 = arith.constant 0 : index
    %c0_2 = arith.constant 0 : index
    %2 = vector.load %arg1[%c0_1, %c0_2] : memref<192x128xbf16, #tpu.memory_space<vmem>>, vector<192x128xbf16>
    %cst = arith.constant dense<0.000000e+00> : vector<10x128xf32>
    %3 = tpu.matmul %1, %2, %cst {dimension_numbers = #tpu.dot_dimension_numbers<[1], [0], [0], [1], [0, 0, 1, 1], [], []>} : vector<10x192xbf16>, vector<192x128xbf16>, vector<10x128xf32> -> vector<10x128xf32>
    %c0_3 = arith.constant 0 : index
    %c0_4 = arith.constant 0 : index
    %4 = vector.load %arg2[%c0_3, %c0_4] : memref<10x128xf32, #tpu.memory_space<vmem>>, vector<10x128xf32>
    %5 = arith.addf %3, %4 : vector<10x128xf32>
    %c0_5 = arith.constant 0 : index
    %c0_6 = arith.constant 0 : index
    %6 = vector.load %arg3[%c0_5, %c0_6] : memref<10x10xf32, #tpu.memory_space<vmem>>, vector<10x10xf32>
    %c0_7 = arith.constant 0 : index
    %c0_8 = arith.constant 0 : index
    %7 = vector.load %arg4[%c0_7, %c0_8] : memref<1x128xf32, #tpu.memory_space<vmem>>, vector<1x128xf32>
    %c0_9 = arith.constant 0 : index
    %c0_10 = arith.constant 0 : index
    %8 = vector.load %arg5[%c0_9, %c0_10] : memref<1x128xf32, #tpu.memory_space<vmem>>, vector<1x128xf32>
    %cst_11 = arith.constant dense<0.000000e+00> : vector<10xf32>
    %9 = vector.multi_reduction <add>, %5, %cst_11 [1] : vector<10x128xf32> to vector<10xf32>
    %10 = vector.shape_cast %9 : vector<10xf32> to vector<10x1xf32>
    %cst_12 = arith.constant 3.125000e-02 : f32
    %11 = vector.broadcast %cst_12 : f32 to vector<10x1xf32>
    %12 = arith.mulf %10, %11 : vector<10x1xf32>
    %13 = vector.broadcast %12 : vector<10x1xf32> to vector<10x128xf32>
    %14 = arith.subf %5, %13 : vector<10x128xf32>
    %15 = arith.mulf %14, %14 : vector<10x128xf32>
    %cst_13 = arith.constant dense<0.000000e+00> : vector<10xf32>
    %16 = vector.multi_reduction <add>, %15, %cst_13 [1] : vector<10x128xf32> to vector<10xf32>
    %17 = vector.shape_cast %16 : vector<10xf32> to vector<10x1xf32>
    %cst_14 = arith.constant 9.600000e+01 : f32
    %18 = vector.broadcast %cst_14 : f32 to vector<10x1xf32>
    %19 = arith.mulf %18, %12 : vector<10x1xf32>
    %20 = arith.mulf %19, %12 : vector<10x1xf32>
    %21 = arith.subf %17, %20 : vector<10x1xf32>
    %cst_15 = arith.constant 3.125000e-02 : f32
    %22 = vector.broadcast %cst_15 : f32 to vector<10x1xf32>
    %23 = arith.mulf %21, %22 : vector<10x1xf32>
    %cst_16 = arith.constant 9.99999974E-6 : f32
    %24 = vector.broadcast %cst_16 : f32 to vector<10x1xf32>
    %25 = arith.addf %23, %24 : vector<10x1xf32>
    %26 = math.rsqrt %25 : vector<10x1xf32>
    %27 = vector.broadcast %26 : vector<10x1xf32> to vector<10x128xf32>
    %28 = arith.mulf %14, %27 : vector<10x128xf32>
    %29 = vector.broadcast %7 : vector<1x128xf32> to vector<10x128xf32>
    %30 = arith.mulf %28, %29 : vector<10x128xf32>
    %31 = vector.broadcast %8 : vector<1x128xf32> to vector<10x128xf32>
    %32 = arith.addf %30, %31 : vector<10x128xf32>
    %33 = arith.truncf %32 : vector<10x128xf32> to vector<10x128xbf16>
    %c0_17 = arith.constant 0 : index
    %c0_18 = arith.constant 0 : index
    %34 = vector.load %arg6[%c0_17, %c0_18] : memref<128x96xbf16, #tpu.memory_space<vmem>>, vector<128x96xbf16>
    %cst_19 = arith.constant dense<0.000000e+00> : vector<10x96xf32>
    %35 = tpu.matmul %33, %34, %cst_19 {dimension_numbers = #tpu.dot_dimension_numbers<[1], [0], [0], [1], [0, 0, 1, 1], [], []>} : vector<10x128xbf16>, vector<128x96xbf16>, vector<10x96xf32> -> vector<10x96xf32>
    %36 = vector.extract_strided_slice %35 {offsets = [0, 0], sizes = [10, 32], strides = [1, 1]} : vector<10x96xf32> to vector<10x32xf32>
    %c0_20 = arith.constant 0 : index
    %c0_21 = arith.constant 0 : index
    %37 = vector.load %arg7[%c0_20, %c0_21] : memref<1x32xf32, #tpu.memory_space<vmem>>, vector<1x32xf32>
    %38 = vector.broadcast %37 : vector<1x32xf32> to vector<10x32xf32>
    %39 = arith.addf %36, %38 : vector<10x32xf32>
    %cst_22 = arith.constant 0.353553385 : f32
    %40 = vector.broadcast %cst_22 : f32 to vector<10x32xf32>
    %41 = arith.mulf %39, %40 : vector<10x32xf32>
    %42 = vector.extract_strided_slice %35 {offsets = [0, 32], sizes = [10, 32], strides = [1, 1]} : vector<10x96xf32> to vector<10x32xf32>
    %43 = vector.extract_strided_slice %35 {offsets = [0, 64], sizes = [10, 32], strides = [1, 1]} : vector<10x96xf32> to vector<10x32xf32>
    %c0_23 = arith.constant 0 : index
    %c0_24 = arith.constant 0 : index
    %44 = vector.load %arg8[%c0_23, %c0_24] : memref<1x32xf32, #tpu.memory_space<vmem>>, vector<1x32xf32>
    %45 = vector.broadcast %44 : vector<1x32xf32> to vector<10x32xf32>
    %46 = arith.addf %43, %45 : vector<10x32xf32>
    %47 = vector.extract_strided_slice %41 {offsets = [0, 0], sizes = [10, 8], strides = [1, 1]} : vector<10x32xf32> to vector<10x8xf32>
    %48 = arith.truncf %47 : vector<10x8xf32> to vector<10x8xbf16>
    %49 = vector.extract_strided_slice %42 {offsets = [0, 0], sizes = [10, 8], strides = [1, 1]} : vector<10x32xf32> to vector<10x8xf32>
    %50 = arith.truncf %49 : vector<10x8xf32> to vector<10x8xbf16>
    %cst_25 = arith.constant dense<0.000000e+00> : vector<10x10xf32>
    %51 = tpu.matmul %48, %50, %cst_25 {dimension_numbers = #tpu.dot_dimension_numbers<[1], [1], [0], [0], [0, 0, 1, 0], [], []>} : vector<10x8xbf16>, vector<10x8xbf16>, vector<10x10xf32> -> vector<10x10xf32>
    %52 = arith.addf %51, %6 : vector<10x10xf32>
    %cst_26 = arith.constant dense<0xFF800000> : vector<10xf32>
    %53 = vector.multi_reduction <maximumf>, %52, %cst_26 [1] : vector<10x10xf32> to vector<10xf32>
    %54 = vector.shape_cast %53 : vector<10xf32> to vector<10x1xf32>
    %55 = vector.broadcast %54 : vector<10x1xf32> to vector<10x10xf32>
    %56 = arith.subf %52, %55 : vector<10x10xf32>
    %57 = math.exp %56 : vector<10x10xf32>
    %cst_27 = arith.constant dense<0.000000e+00> : vector<10xf32>
    %58 = vector.multi_reduction <add>, %57, %cst_27 [1] : vector<10x10xf32> to vector<10xf32>
    %59 = vector.shape_cast %58 : vector<10xf32> to vector<10x1xf32>
    %60 = tpu.reciprocal %59 {approx = true} : vector<10x1xf32> -> vector<10x1xf32>
    %61 = vector.broadcast %60 : vector<10x1xf32> to vector<10x10xf32>
    %62 = arith.mulf %57, %61 : vector<10x10xf32>
    %63 = arith.truncf %62 : vector<10x10xf32> to vector<10x10xbf16>
    %64 = vector.extract_strided_slice %46 {offsets = [0, 0], sizes = [10, 8], strides = [1, 1]} : vector<10x32xf32> to vector<10x8xf32>
    %65 = arith.truncf %64 : vector<10x8xf32> to vector<10x8xbf16>
    %cst_28 = arith.constant dense<0.000000e+00> : vector<10x8xf32>
    %66 = tpu.matmul %63, %65, %cst_28 {dimension_numbers = #tpu.dot_dimension_numbers<[1], [0], [0], [1], [0, 0, 1, 1], [], []>} : vector<10x10xbf16>, vector<10x8xbf16>, vector<10x8xf32> -> vector<10x8xf32>
    %67 = vector.extract_strided_slice %41 {offsets = [0, 8], sizes = [10, 8], strides = [1, 1]} : vector<10x32xf32> to vector<10x8xf32>
    %68 = arith.truncf %67 : vector<10x8xf32> to vector<10x8xbf16>
    %69 = vector.extract_strided_slice %42 {offsets = [0, 8], sizes = [10, 8], strides = [1, 1]} : vector<10x32xf32> to vector<10x8xf32>
    %70 = arith.truncf %69 : vector<10x8xf32> to vector<10x8xbf16>
    %cst_29 = arith.constant dense<0.000000e+00> : vector<10x10xf32>
    %71 = tpu.matmul %68, %70, %cst_29 {dimension_numbers = #tpu.dot_dimension_numbers<[1], [1], [0], [0], [0, 0, 1, 0], [], []>} : vector<10x8xbf16>, vector<10x8xbf16>, vector<10x10xf32> -> vector<10x10xf32>
    %72 = arith.addf %71, %6 : vector<10x10xf32>
    %cst_30 = arith.constant dense<0xFF800000> : vector<10xf32>
    %73 = vector.multi_reduction <maximumf>, %72, %cst_30 [1] : vector<10x10xf32> to vector<10xf32>
    %74 = vector.shape_cast %73 : vector<10xf32> to vector<10x1xf32>
    %75 = vector.broadcast %74 : vector<10x1xf32> to vector<10x10xf32>
    %76 = arith.subf %72, %75 : vector<10x10xf32>
    %77 = math.exp %76 : vector<10x10xf32>
    %cst_31 = arith.constant dense<0.000000e+00> : vector<10xf32>
    %78 = vector.multi_reduction <add>, %77, %cst_31 [1] : vector<10x10xf32> to vector<10xf32>
    %79 = vector.shape_cast %78 : vector<10xf32> to vector<10x1xf32>
    %80 = tpu.reciprocal %79 {approx = true} : vector<10x1xf32> -> vector<10x1xf32>
    %81 = vector.broadcast %80 : vector<10x1xf32> to vector<10x10xf32>
    %82 = arith.mulf %77, %81 : vector<10x10xf32>
    %83 = arith.truncf %82 : vector<10x10xf32> to vector<10x10xbf16>
    %84 = vector.extract_strided_slice %46 {offsets = [0, 8], sizes = [10, 8], strides = [1, 1]} : vector<10x32xf32> to vector<10x8xf32>
    %85 = arith.truncf %84 : vector<10x8xf32> to vector<10x8xbf16>
    %cst_32 = arith.constant dense<0.000000e+00> : vector<10x8xf32>
    %86 = tpu.matmul %83, %85, %cst_32 {dimension_numbers = #tpu.dot_dimension_numbers<[1], [0], [0], [1], [0, 0, 1, 1], [], []>} : vector<10x10xbf16>, vector<10x8xbf16>, vector<10x8xf32> -> vector<10x8xf32>
    %87 = vector.extract_strided_slice %41 {offsets = [0, 16], sizes = [10, 8], strides = [1, 1]} : vector<10x32xf32> to vector<10x8xf32>
    %88 = arith.truncf %87 : vector<10x8xf32> to vector<10x8xbf16>
    %89 = vector.extract_strided_slice %42 {offsets = [0, 16], sizes = [10, 8], strides = [1, 1]} : vector<10x32xf32> to vector<10x8xf32>
    %90 = arith.truncf %89 : vector<10x8xf32> to vector<10x8xbf16>
    %cst_33 = arith.constant dense<0.000000e+00> : vector<10x10xf32>
    %91 = tpu.matmul %88, %90, %cst_33 {dimension_numbers = #tpu.dot_dimension_numbers<[1], [1], [0], [0], [0, 0, 1, 0], [], []>} : vector<10x8xbf16>, vector<10x8xbf16>, vector<10x10xf32> -> vector<10x10xf32>
    %92 = arith.addf %91, %6 : vector<10x10xf32>
    %cst_34 = arith.constant dense<0xFF800000> : vector<10xf32>
    %93 = vector.multi_reduction <maximumf>, %92, %cst_34 [1] : vector<10x10xf32> to vector<10xf32>
    %94 = vector.shape_cast %93 : vector<10xf32> to vector<10x1xf32>
    %95 = vector.broadcast %94 : vector<10x1xf32> to vector<10x10xf32>
    %96 = arith.subf %92, %95 : vector<10x10xf32>
    %97 = math.exp %96 : vector<10x10xf32>
    %cst_35 = arith.constant dense<0.000000e+00> : vector<10xf32>
    %98 = vector.multi_reduction <add>, %97, %cst_35 [1] : vector<10x10xf32> to vector<10xf32>
    %99 = vector.shape_cast %98 : vector<10xf32> to vector<10x1xf32>
    %100 = tpu.reciprocal %99 {approx = true} : vector<10x1xf32> -> vector<10x1xf32>
    %101 = vector.broadcast %100 : vector<10x1xf32> to vector<10x10xf32>
    %102 = arith.mulf %97, %101 : vector<10x10xf32>
    %103 = arith.truncf %102 : vector<10x10xf32> to vector<10x10xbf16>
    %104 = vector.extract_strided_slice %46 {offsets = [0, 16], sizes = [10, 8], strides = [1, 1]} : vector<10x32xf32> to vector<10x8xf32>
    %105 = arith.truncf %104 : vector<10x8xf32> to vector<10x8xbf16>
    %cst_36 = arith.constant dense<0.000000e+00> : vector<10x8xf32>
    %106 = tpu.matmul %103, %105, %cst_36 {dimension_numbers = #tpu.dot_dimension_numbers<[1], [0], [0], [1], [0, 0, 1, 1], [], []>} : vector<10x10xbf16>, vector<10x8xbf16>, vector<10x8xf32> -> vector<10x8xf32>
    %107 = vector.extract_strided_slice %41 {offsets = [0, 24], sizes = [10, 8], strides = [1, 1]} : vector<10x32xf32> to vector<10x8xf32>
    %108 = arith.truncf %107 : vector<10x8xf32> to vector<10x8xbf16>
    %109 = vector.extract_strided_slice %42 {offsets = [0, 24], sizes = [10, 8], strides = [1, 1]} : vector<10x32xf32> to vector<10x8xf32>
    %110 = arith.truncf %109 : vector<10x8xf32> to vector<10x8xbf16>
    %cst_37 = arith.constant dense<0.000000e+00> : vector<10x10xf32>
    %111 = tpu.matmul %108, %110, %cst_37 {dimension_numbers = #tpu.dot_dimension_numbers<[1], [1], [0], [0], [0, 0, 1, 0], [], []>} : vector<10x8xbf16>, vector<10x8xbf16>, vector<10x10xf32> -> vector<10x10xf32>
    %112 = arith.addf %111, %6 : vector<10x10xf32>
    %cst_38 = arith.constant dense<0xFF800000> : vector<10xf32>
    %113 = vector.multi_reduction <maximumf>, %112, %cst_38 [1] : vector<10x10xf32> to vector<10xf32>
    %114 = vector.shape_cast %113 : vector<10xf32> to vector<10x1xf32>
    %115 = vector.broadcast %114 : vector<10x1xf32> to vector<10x10xf32>
    %116 = arith.subf %112, %115 : vector<10x10xf32>
    %117 = math.exp %116 : vector<10x10xf32>
    %cst_39 = arith.constant dense<0.000000e+00> : vector<10xf32>
    %118 = vector.multi_reduction <add>, %117, %cst_39 [1] : vector<10x10xf32> to vector<10xf32>
    %119 = vector.shape_cast %118 : vector<10xf32> to vector<10x1xf32>
    %120 = tpu.reciprocal %119 {approx = true} : vector<10x1xf32> -> vector<10x1xf32>
    %121 = vector.broadcast %120 : vector<10x1xf32> to vector<10x10xf32>
    %122 = arith.mulf %117, %121 : vector<10x10xf32>
    %123 = arith.truncf %122 : vector<10x10xf32> to vector<10x10xbf16>
    %124 = vector.extract_strided_slice %46 {offsets = [0, 24], sizes = [10, 8], strides = [1, 1]} : vector<10x32xf32> to vector<10x8xf32>
    %125 = arith.truncf %124 : vector<10x8xf32> to vector<10x8xbf16>
    %cst_40 = arith.constant dense<0.000000e+00> : vector<10x8xf32>
    %126 = tpu.matmul %123, %125, %cst_40 {dimension_numbers = #tpu.dot_dimension_numbers<[1], [0], [0], [1], [0, 0, 1, 1], [], []>} : vector<10x10xbf16>, vector<10x8xbf16>, vector<10x8xf32> -> vector<10x8xf32>
    %127 = tpu.concatenate %66, %86, %106, %126 in 1 : vector<10x8xf32>, vector<10x8xf32>, vector<10x8xf32>, vector<10x8xf32> -> vector<10x32xf32>
    %128 = arith.truncf %127 : vector<10x32xf32> to vector<10x32xbf16>
    %c0_41 = arith.constant 0 : index
    %c0_42 = arith.constant 0 : index
    %129 = vector.load %arg9[%c0_41, %c0_42] : memref<32x128xbf16, #tpu.memory_space<vmem>>, vector<32x128xbf16>
    %cst_43 = arith.constant dense<0.000000e+00> : vector<10x128xf32>
    %130 = tpu.matmul %128, %129, %cst_43 {dimension_numbers = #tpu.dot_dimension_numbers<[1], [0], [0], [1], [0, 0, 1, 1], [], []>} : vector<10x32xbf16>, vector<32x128xbf16>, vector<10x128xf32> -> vector<10x128xf32>
    %131 = arith.addf %5, %130 : vector<10x128xf32>
    %c0_44 = arith.constant 0 : index
    %c0_45 = arith.constant 0 : index
    %132 = vector.load %arg10[%c0_44, %c0_45] : memref<1x128xf32, #tpu.memory_space<vmem>>, vector<1x128xf32>
    %133 = vector.broadcast %132 : vector<1x128xf32> to vector<10x128xf32>
    %134 = arith.addf %131, %133 : vector<10x128xf32>
    %c0_46 = arith.constant 0 : index
    %c0_47 = arith.constant 0 : index
    %135 = vector.load %arg11[%c0_46, %c0_47] : memref<1x128xf32, #tpu.memory_space<vmem>>, vector<1x128xf32>
    %c0_48 = arith.constant 0 : index
    %c0_49 = arith.constant 0 : index
    %136 = vector.load %arg12[%c0_48, %c0_49] : memref<1x128xf32, #tpu.memory_space<vmem>>, vector<1x128xf32>
    %cst_50 = arith.constant dense<0.000000e+00> : vector<10xf32>
    %137 = vector.multi_reduction <add>, %134, %cst_50 [1] : vector<10x128xf32> to vector<10xf32>
    %138 = vector.shape_cast %137 : vector<10xf32> to vector<10x1xf32>
    %cst_51 = arith.constant 3.125000e-02 : f32
    %139 = vector.broadcast %cst_51 : f32 to vector<10x1xf32>
    %140 = arith.mulf %138, %139 : vector<10x1xf32>
    %141 = vector.broadcast %140 : vector<10x1xf32> to vector<10x128xf32>
    %142 = arith.subf %134, %141 : vector<10x128xf32>
    %143 = arith.mulf %142, %142 : vector<10x128xf32>
    %cst_52 = arith.constant dense<0.000000e+00> : vector<10xf32>
    %144 = vector.multi_reduction <add>, %143, %cst_52 [1] : vector<10x128xf32> to vector<10xf32>
    %145 = vector.shape_cast %144 : vector<10xf32> to vector<10x1xf32>
    %cst_53 = arith.constant 9.600000e+01 : f32
    %146 = vector.broadcast %cst_53 : f32 to vector<10x1xf32>
    %147 = arith.mulf %146, %140 : vector<10x1xf32>
    %148 = arith.mulf %147, %140 : vector<10x1xf32>
    %149 = arith.subf %145, %148 : vector<10x1xf32>
    %cst_54 = arith.constant 3.125000e-02 : f32
    %150 = vector.broadcast %cst_54 : f32 to vector<10x1xf32>
    %151 = arith.mulf %149, %150 : vector<10x1xf32>
    %cst_55 = arith.constant 9.99999974E-6 : f32
    %152 = vector.broadcast %cst_55 : f32 to vector<10x1xf32>
    %153 = arith.addf %151, %152 : vector<10x1xf32>
    %154 = math.rsqrt %153 : vector<10x1xf32>
    %155 = vector.broadcast %154 : vector<10x1xf32> to vector<10x128xf32>
    %156 = arith.mulf %142, %155 : vector<10x128xf32>
    %157 = vector.broadcast %135 : vector<1x128xf32> to vector<10x128xf32>
    %158 = arith.mulf %156, %157 : vector<10x128xf32>
    %159 = vector.broadcast %136 : vector<1x128xf32> to vector<10x128xf32>
    %160 = arith.addf %158, %159 : vector<10x128xf32>
    %161 = arith.truncf %160 : vector<10x128xf32> to vector<10x128xbf16>
    %c0_56 = arith.constant 0 : index
    %c0_57 = arith.constant 0 : index
    %162 = vector.load %arg13[%c0_56, %c0_57] : memref<128x128xbf16, #tpu.memory_space<vmem>>, vector<128x128xbf16>
    %cst_58 = arith.constant dense<0.000000e+00> : vector<10x128xf32>
    %163 = tpu.matmul %161, %162, %cst_58 {dimension_numbers = #tpu.dot_dimension_numbers<[1], [0], [0], [1], [0, 0, 1, 1], [], []>} : vector<10x128xbf16>, vector<128x128xbf16>, vector<10x128xf32> -> vector<10x128xf32>
    %c0_59 = arith.constant 0 : index
    %c0_60 = arith.constant 0 : index
    %164 = vector.load %arg14[%c0_59, %c0_60] : memref<1x128xf32, #tpu.memory_space<vmem>>, vector<1x128xf32>
    %165 = vector.broadcast %164 : vector<1x128xf32> to vector<10x128xf32>
    %166 = arith.addf %163, %165 : vector<10x128xf32>
    %cst_61 = arith.constant 5.000000e-01 : f32
    %167 = vector.broadcast %cst_61 : f32 to vector<10x128xf32>
    %168 = arith.mulf %167, %166 : vector<10x128xf32>
    %cst_62 = arith.constant 0.707106769 : f32
    %169 = vector.broadcast %cst_62 : f32 to vector<10x128xf32>
    %170 = arith.mulf %166, %169 : vector<10x128xf32>
    %cst_63 = arith.constant 0.000000e+00 : f32
    %171 = vector.broadcast %cst_63 : f32 to vector<10x128xf32>
    %172 = arith.cmpf oge, %170, %171 : vector<10x128xf32>
    %cst_64 = arith.constant 1.000000e+00 : f32
    %cst_65 = arith.constant -1.000000e+00 : f32
    %173 = vector.broadcast %cst_64 : f32 to vector<10x128xf32>
    %174 = vector.broadcast %cst_65 : f32 to vector<10x128xf32>
    %175 = arith.select %172, %173, %174 : vector<10x128xi1>, vector<10x128xf32>
    %176 = math.absf %170 : vector<10x128xf32>
    %cst_66 = arith.constant 0.327591091 : f32
    %177 = vector.broadcast %cst_66 : f32 to vector<10x128xf32>
    %178 = arith.mulf %177, %176 : vector<10x128xf32>
    %cst_67 = arith.constant 1.000000e+00 : f32
    %179 = vector.broadcast %cst_67 : f32 to vector<10x128xf32>
    %180 = arith.addf %179, %178 : vector<10x128xf32>
    %181 = tpu.reciprocal %180 {approx = true} : vector<10x128xf32> -> vector<10x128xf32>
    %cst_68 = arith.constant 1.06140542 : f32
    %182 = vector.broadcast %cst_68 : f32 to vector<10x128xf32>
    %183 = arith.mulf %182, %181 : vector<10x128xf32>
    %cst_69 = arith.constant -1.45315206 : f32
    %184 = vector.broadcast %cst_69 : f32 to vector<10x128xf32>
    %185 = arith.addf %183, %184 : vector<10x128xf32>
    %186 = arith.mulf %185, %181 : vector<10x128xf32>
    %cst_70 = arith.constant 1.42141378 : f32
    %187 = vector.broadcast %cst_70 : f32 to vector<10x128xf32>
    %188 = arith.addf %186, %187 : vector<10x128xf32>
    %189 = arith.mulf %188, %181 : vector<10x128xf32>
    %cst_71 = arith.constant -0.284496725 : f32
    %190 = vector.broadcast %cst_71 : f32 to vector<10x128xf32>
    %191 = arith.addf %189, %190 : vector<10x128xf32>
    %192 = arith.mulf %191, %181 : vector<10x128xf32>
    %cst_72 = arith.constant 0.254829586 : f32
    %193 = vector.broadcast %cst_72 : f32 to vector<10x128xf32>
    %194 = arith.addf %192, %193 : vector<10x128xf32>
    %195 = arith.mulf %194, %181 : vector<10x128xf32>
    %cst_73 = arith.constant 0.000000e+00 : f32
    %196 = vector.broadcast %cst_73 : f32 to vector<10x128xf32>
    %197 = arith.subf %196, %176 : vector<10x128xf32>
    %198 = arith.mulf %197, %176 : vector<10x128xf32>
    %199 = math.exp %198 : vector<10x128xf32>
    %200 = arith.mulf %195, %199 : vector<10x128xf32>
    %cst_74 = arith.constant 1.000000e+00 : f32
    %201 = vector.broadcast %cst_74 : f32 to vector<10x128xf32>
    %202 = arith.subf %201, %200 : vector<10x128xf32>
    %203 = arith.mulf %175, %202 : vector<10x128xf32>
    %cst_75 = arith.constant 1.000000e+00 : f32
    %204 = vector.broadcast %cst_75 : f32 to vector<10x128xf32>
    %205 = arith.addf %204, %203 : vector<10x128xf32>
    %206 = arith.mulf %168, %205 : vector<10x128xf32>
    %207 = arith.truncf %206 : vector<10x128xf32> to vector<10x128xbf16>
    %c0_76 = arith.constant 0 : index
    %c0_77 = arith.constant 0 : index
    %208 = vector.load %arg15[%c0_76, %c0_77] : memref<128x128xbf16, #tpu.memory_space<vmem>>, vector<128x128xbf16>
    %cst_78 = arith.constant dense<0.000000e+00> : vector<10x128xf32>
    %209 = tpu.matmul %207, %208, %cst_78 {dimension_numbers = #tpu.dot_dimension_numbers<[1], [0], [0], [1], [0, 0, 1, 1], [], []>} : vector<10x128xbf16>, vector<128x128xbf16>, vector<10x128xf32> -> vector<10x128xf32>
    %c0_79 = arith.constant 0 : index
    %c0_80 = arith.constant 0 : index
    %210 = vector.load %arg16[%c0_79, %c0_80] : memref<1x128xf32, #tpu.memory_space<vmem>>, vector<1x128xf32>
    %211 = vector.broadcast %210 : vector<1x128xf32> to vector<10x128xf32>
    %212 = arith.addf %209, %211 : vector<10x128xf32>
    %213 = arith.addf %134, %212 : vector<10x128xf32>
    %c0_81 = arith.constant 0 : index
    %c0_82 = arith.constant 0 : index
    %214 = vector.load %arg17[%c0_81, %c0_82] : memref<1x128xf32, #tpu.memory_space<vmem>>, vector<1x128xf32>
    %c0_83 = arith.constant 0 : index
    %c0_84 = arith.constant 0 : index
    %215 = vector.load %arg18[%c0_83, %c0_84] : memref<1x128xf32, #tpu.memory_space<vmem>>, vector<1x128xf32>
    %cst_85 = arith.constant dense<0.000000e+00> : vector<10xf32>
    %216 = vector.multi_reduction <add>, %213, %cst_85 [1] : vector<10x128xf32> to vector<10xf32>
    %217 = vector.shape_cast %216 : vector<10xf32> to vector<10x1xf32>
    %cst_86 = arith.constant 3.125000e-02 : f32
    %218 = vector.broadcast %cst_86 : f32 to vector<10x1xf32>
    %219 = arith.mulf %217, %218 : vector<10x1xf32>
    %220 = vector.broadcast %219 : vector<10x1xf32> to vector<10x128xf32>
    %221 = arith.subf %213, %220 : vector<10x128xf32>
    %222 = arith.mulf %221, %221 : vector<10x128xf32>
    %cst_87 = arith.constant dense<0.000000e+00> : vector<10xf32>
    %223 = vector.multi_reduction <add>, %222, %cst_87 [1] : vector<10x128xf32> to vector<10xf32>
    %224 = vector.shape_cast %223 : vector<10xf32> to vector<10x1xf32>
    %cst_88 = arith.constant 9.600000e+01 : f32
    %225 = vector.broadcast %cst_88 : f32 to vector<10x1xf32>
    %226 = arith.mulf %225, %219 : vector<10x1xf32>
    %227 = arith.mulf %226, %219 : vector<10x1xf32>
    %228 = arith.subf %224, %227 : vector<10x1xf32>
    %cst_89 = arith.constant 3.125000e-02 : f32
    %229 = vector.broadcast %cst_89 : f32 to vector<10x1xf32>
    %230 = arith.mulf %228, %229 : vector<10x1xf32>
    %cst_90 = arith.constant 9.99999974E-6 : f32
    %231 = vector.broadcast %cst_90 : f32 to vector<10x1xf32>
    %232 = arith.addf %230, %231 : vector<10x1xf32>
    %233 = math.rsqrt %232 : vector<10x1xf32>
    %234 = vector.broadcast %233 : vector<10x1xf32> to vector<10x128xf32>
    %235 = arith.mulf %221, %234 : vector<10x128xf32>
    %236 = vector.broadcast %214 : vector<1x128xf32> to vector<10x128xf32>
    %237 = arith.mulf %235, %236 : vector<10x128xf32>
    %238 = vector.broadcast %215 : vector<1x128xf32> to vector<10x128xf32>
    %239 = arith.addf %237, %238 : vector<10x128xf32>
    %240 = arith.truncf %239 : vector<10x128xf32> to vector<10x128xbf16>
    %c0_91 = arith.constant 0 : index
    %c0_92 = arith.constant 0 : index
    %241 = vector.load %arg19[%c0_91, %c0_92] : memref<128x96xbf16, #tpu.memory_space<vmem>>, vector<128x96xbf16>
    %cst_93 = arith.constant dense<0.000000e+00> : vector<10x96xf32>
    %242 = tpu.matmul %240, %241, %cst_93 {dimension_numbers = #tpu.dot_dimension_numbers<[1], [0], [0], [1], [0, 0, 1, 1], [], []>} : vector<10x128xbf16>, vector<128x96xbf16>, vector<10x96xf32> -> vector<10x96xf32>
    %243 = vector.extract_strided_slice %242 {offsets = [0, 0], sizes = [10, 32], strides = [1, 1]} : vector<10x96xf32> to vector<10x32xf32>
    %c0_94 = arith.constant 0 : index
    %c0_95 = arith.constant 0 : index
    %244 = vector.load %arg20[%c0_94, %c0_95] : memref<1x32xf32, #tpu.memory_space<vmem>>, vector<1x32xf32>
    %245 = vector.broadcast %244 : vector<1x32xf32> to vector<10x32xf32>
    %246 = arith.addf %243, %245 : vector<10x32xf32>
    %cst_96 = arith.constant 0.353553385 : f32
    %247 = vector.broadcast %cst_96 : f32 to vector<10x32xf32>
    %248 = arith.mulf %246, %247 : vector<10x32xf32>
    %249 = vector.extract_strided_slice %242 {offsets = [0, 32], sizes = [10, 32], strides = [1, 1]} : vector<10x96xf32> to vector<10x32xf32>
    %250 = vector.extract_strided_slice %242 {offsets = [0, 64], sizes = [10, 32], strides = [1, 1]} : vector<10x96xf32> to vector<10x32xf32>
    %c0_97 = arith.constant 0 : index
    %c0_98 = arith.constant 0 : index
    %251 = vector.load %arg21[%c0_97, %c0_98] : memref<1x32xf32, #tpu.memory_space<vmem>>, vector<1x32xf32>
    %252 = vector.broadcast %251 : vector<1x32xf32> to vector<10x32xf32>
    %253 = arith.addf %250, %252 : vector<10x32xf32>
    %254 = vector.extract_strided_slice %248 {offsets = [0, 0], sizes = [10, 8], strides = [1, 1]} : vector<10x32xf32> to vector<10x8xf32>
    %255 = arith.truncf %254 : vector<10x8xf32> to vector<10x8xbf16>
    %256 = vector.extract_strided_slice %249 {offsets = [0, 0], sizes = [10, 8], strides = [1, 1]} : vector<10x32xf32> to vector<10x8xf32>
    %257 = arith.truncf %256 : vector<10x8xf32> to vector<10x8xbf16>
    %cst_99 = arith.constant dense<0.000000e+00> : vector<10x10xf32>
    %258 = tpu.matmul %255, %257, %cst_99 {dimension_numbers = #tpu.dot_dimension_numbers<[1], [1], [0], [0], [0, 0, 1, 0], [], []>} : vector<10x8xbf16>, vector<10x8xbf16>, vector<10x10xf32> -> vector<10x10xf32>
    %259 = arith.addf %258, %6 : vector<10x10xf32>
    %cst_100 = arith.constant dense<0xFF800000> : vector<10xf32>
    %260 = vector.multi_reduction <maximumf>, %259, %cst_100 [1] : vector<10x10xf32> to vector<10xf32>
    %261 = vector.shape_cast %260 : vector<10xf32> to vector<10x1xf32>
    %262 = vector.broadcast %261 : vector<10x1xf32> to vector<10x10xf32>
    %263 = arith.subf %259, %262 : vector<10x10xf32>
    %264 = math.exp %263 : vector<10x10xf32>
    %cst_101 = arith.constant dense<0.000000e+00> : vector<10xf32>
    %265 = vector.multi_reduction <add>, %264, %cst_101 [1] : vector<10x10xf32> to vector<10xf32>
    %266 = vector.shape_cast %265 : vector<10xf32> to vector<10x1xf32>
    %267 = tpu.reciprocal %266 {approx = true} : vector<10x1xf32> -> vector<10x1xf32>
    %268 = vector.broadcast %267 : vector<10x1xf32> to vector<10x10xf32>
    %269 = arith.mulf %264, %268 : vector<10x10xf32>
    %270 = arith.truncf %269 : vector<10x10xf32> to vector<10x10xbf16>
    %271 = vector.extract_strided_slice %253 {offsets = [0, 0], sizes = [10, 8], strides = [1, 1]} : vector<10x32xf32> to vector<10x8xf32>
    %272 = arith.truncf %271 : vector<10x8xf32> to vector<10x8xbf16>
    %cst_102 = arith.constant dense<0.000000e+00> : vector<10x8xf32>
    %273 = tpu.matmul %270, %272, %cst_102 {dimension_numbers = #tpu.dot_dimension_numbers<[1], [0], [0], [1], [0, 0, 1, 1], [], []>} : vector<10x10xbf16>, vector<10x8xbf16>, vector<10x8xf32> -> vector<10x8xf32>
    %274 = vector.extract_strided_slice %248 {offsets = [0, 8], sizes = [10, 8], strides = [1, 1]} : vector<10x32xf32> to vector<10x8xf32>
    %275 = arith.truncf %274 : vector<10x8xf32> to vector<10x8xbf16>
    %276 = vector.extract_strided_slice %249 {offsets = [0, 8], sizes = [10, 8], strides = [1, 1]} : vector<10x32xf32> to vector<10x8xf32>
    %277 = arith.truncf %276 : vector<10x8xf32> to vector<10x8xbf16>
    %cst_103 = arith.constant dense<0.000000e+00> : vector<10x10xf32>
    %278 = tpu.matmul %275, %277, %cst_103 {dimension_numbers = #tpu.dot_dimension_numbers<[1], [1], [0], [0], [0, 0, 1, 0], [], []>} : vector<10x8xbf16>, vector<10x8xbf16>, vector<10x10xf32> -> vector<10x10xf32>
    %279 = arith.addf %278, %6 : vector<10x10xf32>
    %cst_104 = arith.constant dense<0xFF800000> : vector<10xf32>
    %280 = vector.multi_reduction <maximumf>, %279, %cst_104 [1] : vector<10x10xf32> to vector<10xf32>
    %281 = vector.shape_cast %280 : vector<10xf32> to vector<10x1xf32>
    %282 = vector.broadcast %281 : vector<10x1xf32> to vector<10x10xf32>
    %283 = arith.subf %279, %282 : vector<10x10xf32>
    %284 = math.exp %283 : vector<10x10xf32>
    %cst_105 = arith.constant dense<0.000000e+00> : vector<10xf32>
    %285 = vector.multi_reduction <add>, %284, %cst_105 [1] : vector<10x10xf32> to vector<10xf32>
    %286 = vector.shape_cast %285 : vector<10xf32> to vector<10x1xf32>
    %287 = tpu.reciprocal %286 {approx = true} : vector<10x1xf32> -> vector<10x1xf32>
    %288 = vector.broadcast %287 : vector<10x1xf32> to vector<10x10xf32>
    %289 = arith.mulf %284, %288 : vector<10x10xf32>
    %290 = arith.truncf %289 : vector<10x10xf32> to vector<10x10xbf16>
    %291 = vector.extract_strided_slice %253 {offsets = [0, 8], sizes = [10, 8], strides = [1, 1]} : vector<10x32xf32> to vector<10x8xf32>
    %292 = arith.truncf %291 : vector<10x8xf32> to vector<10x8xbf16>
    %cst_106 = arith.constant dense<0.000000e+00> : vector<10x8xf32>
    %293 = tpu.matmul %290, %292, %cst_106 {dimension_numbers = #tpu.dot_dimension_numbers<[1], [0], [0], [1], [0, 0, 1, 1], [], []>} : vector<10x10xbf16>, vector<10x8xbf16>, vector<10x8xf32> -> vector<10x8xf32>
    %294 = vector.extract_strided_slice %248 {offsets = [0, 16], sizes = [10, 8], strides = [1, 1]} : vector<10x32xf32> to vector<10x8xf32>
    %295 = arith.truncf %294 : vector<10x8xf32> to vector<10x8xbf16>
    %296 = vector.extract_strided_slice %249 {offsets = [0, 16], sizes = [10, 8], strides = [1, 1]} : vector<10x32xf32> to vector<10x8xf32>
    %297 = arith.truncf %296 : vector<10x8xf32> to vector<10x8xbf16>
    %cst_107 = arith.constant dense<0.000000e+00> : vector<10x10xf32>
    %298 = tpu.matmul %295, %297, %cst_107 {dimension_numbers = #tpu.dot_dimension_numbers<[1], [1], [0], [0], [0, 0, 1, 0], [], []>} : vector<10x8xbf16>, vector<10x8xbf16>, vector<10x10xf32> -> vector<10x10xf32>
    %299 = arith.addf %298, %6 : vector<10x10xf32>
    %cst_108 = arith.constant dense<0xFF800000> : vector<10xf32>
    %300 = vector.multi_reduction <maximumf>, %299, %cst_108 [1] : vector<10x10xf32> to vector<10xf32>
    %301 = vector.shape_cast %300 : vector<10xf32> to vector<10x1xf32>
    %302 = vector.broadcast %301 : vector<10x1xf32> to vector<10x10xf32>
    %303 = arith.subf %299, %302 : vector<10x10xf32>
    %304 = math.exp %303 : vector<10x10xf32>
    %cst_109 = arith.constant dense<0.000000e+00> : vector<10xf32>
    %305 = vector.multi_reduction <add>, %304, %cst_109 [1] : vector<10x10xf32> to vector<10xf32>
    %306 = vector.shape_cast %305 : vector<10xf32> to vector<10x1xf32>
    %307 = tpu.reciprocal %306 {approx = true} : vector<10x1xf32> -> vector<10x1xf32>
    %308 = vector.broadcast %307 : vector<10x1xf32> to vector<10x10xf32>
    %309 = arith.mulf %304, %308 : vector<10x10xf32>
    %310 = arith.truncf %309 : vector<10x10xf32> to vector<10x10xbf16>
    %311 = vector.extract_strided_slice %253 {offsets = [0, 16], sizes = [10, 8], strides = [1, 1]} : vector<10x32xf32> to vector<10x8xf32>
    %312 = arith.truncf %311 : vector<10x8xf32> to vector<10x8xbf16>
    %cst_110 = arith.constant dense<0.000000e+00> : vector<10x8xf32>
    %313 = tpu.matmul %310, %312, %cst_110 {dimension_numbers = #tpu.dot_dimension_numbers<[1], [0], [0], [1], [0, 0, 1, 1], [], []>} : vector<10x10xbf16>, vector<10x8xbf16>, vector<10x8xf32> -> vector<10x8xf32>
    %314 = vector.extract_strided_slice %248 {offsets = [0, 24], sizes = [10, 8], strides = [1, 1]} : vector<10x32xf32> to vector<10x8xf32>
    %315 = arith.truncf %314 : vector<10x8xf32> to vector<10x8xbf16>
    %316 = vector.extract_strided_slice %249 {offsets = [0, 24], sizes = [10, 8], strides = [1, 1]} : vector<10x32xf32> to vector<10x8xf32>
    %317 = arith.truncf %316 : vector<10x8xf32> to vector<10x8xbf16>
    %cst_111 = arith.constant dense<0.000000e+00> : vector<10x10xf32>
    %318 = tpu.matmul %315, %317, %cst_111 {dimension_numbers = #tpu.dot_dimension_numbers<[1], [1], [0], [0], [0, 0, 1, 0], [], []>} : vector<10x8xbf16>, vector<10x8xbf16>, vector<10x10xf32> -> vector<10x10xf32>
    %319 = arith.addf %318, %6 : vector<10x10xf32>
    %cst_112 = arith.constant dense<0xFF800000> : vector<10xf32>
    %320 = vector.multi_reduction <maximumf>, %319, %cst_112 [1] : vector<10x10xf32> to vector<10xf32>
    %321 = vector.shape_cast %320 : vector<10xf32> to vector<10x1xf32>
    %322 = vector.broadcast %321 : vector<10x1xf32> to vector<10x10xf32>
    %323 = arith.subf %319, %322 : vector<10x10xf32>
    %324 = math.exp %323 : vector<10x10xf32>
    %cst_113 = arith.constant dense<0.000000e+00> : vector<10xf32>
    %325 = vector.multi_reduction <add>, %324, %cst_113 [1] : vector<10x10xf32> to vector<10xf32>
    %326 = vector.shape_cast %325 : vector<10xf32> to vector<10x1xf32>
    %327 = tpu.reciprocal %326 {approx = true} : vector<10x1xf32> -> vector<10x1xf32>
    %328 = vector.broadcast %327 : vector<10x1xf32> to vector<10x10xf32>
    %329 = arith.mulf %324, %328 : vector<10x10xf32>
    %330 = arith.truncf %329 : vector<10x10xf32> to vector<10x10xbf16>
    %331 = vector.extract_strided_slice %253 {offsets = [0, 24], sizes = [10, 8], strides = [1, 1]} : vector<10x32xf32> to vector<10x8xf32>
    %332 = arith.truncf %331 : vector<10x8xf32> to vector<10x8xbf16>
    %cst_114 = arith.constant dense<0.000000e+00> : vector<10x8xf32>
    %333 = tpu.matmul %330, %332, %cst_114 {dimension_numbers = #tpu.dot_dimension_numbers<[1], [0], [0], [1], [0, 0, 1, 1], [], []>} : vector<10x10xbf16>, vector<10x8xbf16>, vector<10x8xf32> -> vector<10x8xf32>
    %334 = tpu.concatenate %273, %293, %313, %333 in 1 : vector<10x8xf32>, vector<10x8xf32>, vector<10x8xf32>, vector<10x8xf32> -> vector<10x32xf32>
    %335 = arith.truncf %334 : vector<10x32xf32> to vector<10x32xbf16>
    %c0_115 = arith.constant 0 : index
    %c0_116 = arith.constant 0 : index
    %336 = vector.load %arg22[%c0_115, %c0_116] : memref<32x128xbf16, #tpu.memory_space<vmem>>, vector<32x128xbf16>
    %cst_117 = arith.constant dense<0.000000e+00> : vector<10x128xf32>
    %337 = tpu.matmul %335, %336, %cst_117 {dimension_numbers = #tpu.dot_dimension_numbers<[1], [0], [0], [1], [0, 0, 1, 1], [], []>} : vector<10x32xbf16>, vector<32x128xbf16>, vector<10x128xf32> -> vector<10x128xf32>
    %338 = arith.addf %213, %337 : vector<10x128xf32>
    %c0_118 = arith.constant 0 : index
    %c0_119 = arith.constant 0 : index
    %339 = vector.load %arg23[%c0_118, %c0_119] : memref<1x128xf32, #tpu.memory_space<vmem>>, vector<1x128xf32>
    %340 = vector.broadcast %339 : vector<1x128xf32> to vector<10x128xf32>
    %341 = arith.addf %338, %340 : vector<10x128xf32>
    %c0_120 = arith.constant 0 : index
    %c0_121 = arith.constant 0 : index
    %342 = vector.load %arg24[%c0_120, %c0_121] : memref<1x128xf32, #tpu.memory_space<vmem>>, vector<1x128xf32>
    %c0_122 = arith.constant 0 : index
    %c0_123 = arith.constant 0 : index
    %343 = vector.load %arg25[%c0_122, %c0_123] : memref<1x128xf32, #tpu.memory_space<vmem>>, vector<1x128xf32>
    %cst_124 = arith.constant dense<0.000000e+00> : vector<10xf32>
    %344 = vector.multi_reduction <add>, %341, %cst_124 [1] : vector<10x128xf32> to vector<10xf32>
    %345 = vector.shape_cast %344 : vector<10xf32> to vector<10x1xf32>
    %cst_125 = arith.constant 3.125000e-02 : f32
    %346 = vector.broadcast %cst_125 : f32 to vector<10x1xf32>
    %347 = arith.mulf %345, %346 : vector<10x1xf32>
    %348 = vector.broadcast %347 : vector<10x1xf32> to vector<10x128xf32>
    %349 = arith.subf %341, %348 : vector<10x128xf32>
    %350 = arith.mulf %349, %349 : vector<10x128xf32>
    %cst_126 = arith.constant dense<0.000000e+00> : vector<10xf32>
    %351 = vector.multi_reduction <add>, %350, %cst_126 [1] : vector<10x128xf32> to vector<10xf32>
    %352 = vector.shape_cast %351 : vector<10xf32> to vector<10x1xf32>
    %cst_127 = arith.constant 9.600000e+01 : f32
    %353 = vector.broadcast %cst_127 : f32 to vector<10x1xf32>
    %354 = arith.mulf %353, %347 : vector<10x1xf32>
    %355 = arith.mulf %354, %347 : vector<10x1xf32>
    %356 = arith.subf %352, %355 : vector<10x1xf32>
    %cst_128 = arith.constant 3.125000e-02 : f32
    %357 = vector.broadcast %cst_128 : f32 to vector<10x1xf32>
    %358 = arith.mulf %356, %357 : vector<10x1xf32>
    %cst_129 = arith.constant 9.99999974E-6 : f32
    %359 = vector.broadcast %cst_129 : f32 to vector<10x1xf32>
    %360 = arith.addf %358, %359 : vector<10x1xf32>
    %361 = math.rsqrt %360 : vector<10x1xf32>
    %362 = vector.broadcast %361 : vector<10x1xf32> to vector<10x128xf32>
    %363 = arith.mulf %349, %362 : vector<10x128xf32>
    %364 = vector.broadcast %342 : vector<1x128xf32> to vector<10x128xf32>
    %365 = arith.mulf %363, %364 : vector<10x128xf32>
    %366 = vector.broadcast %343 : vector<1x128xf32> to vector<10x128xf32>
    %367 = arith.addf %365, %366 : vector<10x128xf32>
    %368 = arith.truncf %367 : vector<10x128xf32> to vector<10x128xbf16>
    %c0_130 = arith.constant 0 : index
    %c0_131 = arith.constant 0 : index
    %369 = vector.load %arg26[%c0_130, %c0_131] : memref<128x128xbf16, #tpu.memory_space<vmem>>, vector<128x128xbf16>
    %cst_132 = arith.constant dense<0.000000e+00> : vector<10x128xf32>
    %370 = tpu.matmul %368, %369, %cst_132 {dimension_numbers = #tpu.dot_dimension_numbers<[1], [0], [0], [1], [0, 0, 1, 1], [], []>} : vector<10x128xbf16>, vector<128x128xbf16>, vector<10x128xf32> -> vector<10x128xf32>
    %c0_133 = arith.constant 0 : index
    %c0_134 = arith.constant 0 : index
    %371 = vector.load %arg27[%c0_133, %c0_134] : memref<1x128xf32, #tpu.memory_space<vmem>>, vector<1x128xf32>
    %372 = vector.broadcast %371 : vector<1x128xf32> to vector<10x128xf32>
    %373 = arith.addf %370, %372 : vector<10x128xf32>
    %cst_135 = arith.constant 5.000000e-01 : f32
    %374 = vector.broadcast %cst_135 : f32 to vector<10x128xf32>
    %375 = arith.mulf %374, %373 : vector<10x128xf32>
    %cst_136 = arith.constant 0.707106769 : f32
    %376 = vector.broadcast %cst_136 : f32 to vector<10x128xf32>
    %377 = arith.mulf %373, %376 : vector<10x128xf32>
    %cst_137 = arith.constant 0.000000e+00 : f32
    %378 = vector.broadcast %cst_137 : f32 to vector<10x128xf32>
    %379 = arith.cmpf oge, %377, %378 : vector<10x128xf32>
    %cst_138 = arith.constant 1.000000e+00 : f32
    %cst_139 = arith.constant -1.000000e+00 : f32
    %380 = vector.broadcast %cst_138 : f32 to vector<10x128xf32>
    %381 = vector.broadcast %cst_139 : f32 to vector<10x128xf32>
    %382 = arith.select %379, %380, %381 : vector<10x128xi1>, vector<10x128xf32>
    %383 = math.absf %377 : vector<10x128xf32>
    %cst_140 = arith.constant 0.327591091 : f32
    %384 = vector.broadcast %cst_140 : f32 to vector<10x128xf32>
    %385 = arith.mulf %384, %383 : vector<10x128xf32>
    %cst_141 = arith.constant 1.000000e+00 : f32
    %386 = vector.broadcast %cst_141 : f32 to vector<10x128xf32>
    %387 = arith.addf %386, %385 : vector<10x128xf32>
    %388 = tpu.reciprocal %387 {approx = true} : vector<10x128xf32> -> vector<10x128xf32>
    %cst_142 = arith.constant 1.06140542 : f32
    %389 = vector.broadcast %cst_142 : f32 to vector<10x128xf32>
    %390 = arith.mulf %389, %388 : vector<10x128xf32>
    %cst_143 = arith.constant -1.45315206 : f32
    %391 = vector.broadcast %cst_143 : f32 to vector<10x128xf32>
    %392 = arith.addf %390, %391 : vector<10x128xf32>
    %393 = arith.mulf %392, %388 : vector<10x128xf32>
    %cst_144 = arith.constant 1.42141378 : f32
    %394 = vector.broadcast %cst_144 : f32 to vector<10x128xf32>
    %395 = arith.addf %393, %394 : vector<10x128xf32>
    %396 = arith.mulf %395, %388 : vector<10x128xf32>
    %cst_145 = arith.constant -0.284496725 : f32
    %397 = vector.broadcast %cst_145 : f32 to vector<10x128xf32>
    %398 = arith.addf %396, %397 : vector<10x128xf32>
    %399 = arith.mulf %398, %388 : vector<10x128xf32>
    %cst_146 = arith.constant 0.254829586 : f32
    %400 = vector.broadcast %cst_146 : f32 to vector<10x128xf32>
    %401 = arith.addf %399, %400 : vector<10x128xf32>
    %402 = arith.mulf %401, %388 : vector<10x128xf32>
    %cst_147 = arith.constant 0.000000e+00 : f32
    %403 = vector.broadcast %cst_147 : f32 to vector<10x128xf32>
    %404 = arith.subf %403, %383 : vector<10x128xf32>
    %405 = arith.mulf %404, %383 : vector<10x128xf32>
    %406 = math.exp %405 : vector<10x128xf32>
    %407 = arith.mulf %402, %406 : vector<10x128xf32>
    %cst_148 = arith.constant 1.000000e+00 : f32
    %408 = vector.broadcast %cst_148 : f32 to vector<10x128xf32>
    %409 = arith.subf %408, %407 : vector<10x128xf32>
    %410 = arith.mulf %382, %409 : vector<10x128xf32>
    %cst_149 = arith.constant 1.000000e+00 : f32
    %411 = vector.broadcast %cst_149 : f32 to vector<10x128xf32>
    %412 = arith.addf %411, %410 : vector<10x128xf32>
    %413 = arith.mulf %375, %412 : vector<10x128xf32>
    %414 = arith.truncf %413 : vector<10x128xf32> to vector<10x128xbf16>
    %c0_150 = arith.constant 0 : index
    %c0_151 = arith.constant 0 : index
    %415 = vector.load %arg28[%c0_150, %c0_151] : memref<128x128xbf16, #tpu.memory_space<vmem>>, vector<128x128xbf16>
    %cst_152 = arith.constant dense<0.000000e+00> : vector<10x128xf32>
    %416 = tpu.matmul %414, %415, %cst_152 {dimension_numbers = #tpu.dot_dimension_numbers<[1], [0], [0], [1], [0, 0, 1, 1], [], []>} : vector<10x128xbf16>, vector<128x128xbf16>, vector<10x128xf32> -> vector<10x128xf32>
    %c0_153 = arith.constant 0 : index
    %c0_154 = arith.constant 0 : index
    %417 = vector.load %arg29[%c0_153, %c0_154] : memref<1x128xf32, #tpu.memory_space<vmem>>, vector<1x128xf32>
    %418 = vector.broadcast %417 : vector<1x128xf32> to vector<10x128xf32>
    %419 = arith.addf %416, %418 : vector<10x128xf32>
    %420 = arith.addf %341, %419 : vector<10x128xf32>
    %c0_155 = arith.constant 0 : index
    %c0_156 = arith.constant 0 : index
    %421 = vector.load %arg30[%c0_155, %c0_156] : memref<10x128xf32, #tpu.memory_space<vmem>>, vector<10x128xf32>
    tpu.vector_store %arg30[%c0_155, %c0_156], %420 {strides = array<i32>} : memref<10x128xf32, #tpu.memory_space<vmem>>, vector<10x128xf32>,
    return
  }
}

</mosaic_0001>

<llo_original>
// kernel: tile.9
$region0: #{tile.9}
  %s0 = inlined_call_operand.vmem [shape: f32[2,5,128], index: 0, kind: input, shape index: {}]
  %s1 = inlined_call_operand.vmem [shape: f32[10,128], index: 1, kind: output, shape index: {}]
  %v2 = vld [vmem:[%s0] sm:$0x1f]
  %3 = vst [vmem:[%s1] sm:$0x1f] %v2
  %s4 = scalar_lea.vmem %s0, 8
  %v5 = vld [vmem:[%s4] sm:$0x1f]
  %s6 = scalar_lea.vmem %s1, 5
  %7 = vst [vmem:[%s6] sm:$0x1f] %v5

// kernel: vit_forward.1
$region0: #{vit_forward.1}
  #allocation0 [shape = 'u32[]', space=smem, size = 0x4, offset = 0x4, fixed_abs, tag = 'smem constant byte address 0x4 - core index']
  #allocation1 [shape = 'u32[72,128]{1,0:T(1,128)}', space=vmem, size = 0x9000, scoped, tag = 'internal scratch']
  %s0 = inlined_call_operand.smem [shape: u32[31], index: -1, kind: input, shape index: {}]
  %s1 = sld [smem:[%s0]]
  %s2 = scalar_lea.smem %s0, 1
  %s3 = sld [smem:[%s2]]
  %s4 = scalar_lea.smem %s0, 2
  %s5 = sld [smem:[%s4]]
  %s6 = scalar_lea.smem %s0, 3
  %s7 = sld [smem:[%s6]]
  %s8 = scalar_lea.smem %s0, 4
  %s9 = sld [smem:[%s8]]
  %s10 = scalar_lea.smem %s0, 5
  %s11 = sld [smem:[%s10]]
  %s12 = scalar_lea.smem %s0, 6
  %s13 = sld [smem:[%s12]]
  %s14 = scalar_lea.smem %s0, 7
  %s15 = sld [smem:[%s14]]
  %s16 = scalar_lea.smem %s0, 8
  %s17 = sld [smem:[%s16]]
  %s18 = scalar_lea.smem %s0, 9
  %s19 = sld [smem:[%s18]]
  %s20 = scalar_lea.smem %s0, 10
  %s21 = sld [smem:[%s20]]
  %s22 = scalar_lea.smem %s0, 11
  %s23 = sld [smem:[%s22]]
  %s24 = scalar_lea.smem %s0, 12
  %s25 = sld [smem:[%s24]]
  %s26 = scalar_lea.smem %s0, 13
  %s27 = sld [smem:[%s26]]
  %s28 = scalar_lea.smem %s0, 14
  %s29 = sld [smem:[%s28]]
  %s30 = scalar_lea.smem %s0, 15
  %s31 = sld [smem:[%s30]]
  %s32 = scalar_lea.smem %s0, 16
  %s33 = sld [smem:[%s32]]
  %s34 = scalar_lea.smem %s0, 17
  %s35 = sld [smem:[%s34]]
  %s36 = scalar_lea.smem %s0, 18
  %s37 = sld [smem:[%s36]]
  %s38 = scalar_lea.smem %s0, 19
  %s39 = sld [smem:[%s38]]
  %s40 = scalar_lea.smem %s0, 20
  %s41 = sld [smem:[%s40]]
  %s42 = scalar_lea.smem %s0, 21
  %s43 = sld [smem:[%s42]]
  %s44 = scalar_lea.smem %s0, 22
  %s45 = sld [smem:[%s44]]
  %s46 = scalar_lea.smem %s0, 23
  %s47 = sld [smem:[%s46]]
  %s48 = scalar_lea.smem %s0, 24
  %s49 = sld [smem:[%s48]]
  %s50 = scalar_lea.smem %s0, 25
  %s51 = sld [smem:[%s50]]
  %s52 = scalar_lea.smem %s0, 26
  %s53 = sld [smem:[%s52]]
  %s54 = scalar_lea.smem %s0, 27
  %s55 = sld [smem:[%s54]]
  %s56 = scalar_lea.smem %s0, 28
  %s57 = sld [smem:[%s56]]
  %s58 = scalar_lea.smem %s0, 29
  %s59 = sld [smem:[%s58]]
  %s60 = scalar_lea.smem %s0, 30
  %s61 = sld [smem:[%s60]]
  %s62 = sld [smem:[#allocation0]]
  $region130: #{vit_forward.1} parent=0
    _
  %s64 = ssub.s32 1, %s62
  %s65 = scalar_select 0, %s64, %s62
  // Predicated region
  $region2: #{vit_forward.1} parent=0 // pred_check
    _
  $region3: #{vit_forward.1} parent=0 // pred_check_branch
    %67 = sbr.rel (0) target = $region5
  $region4: #{vit_forward.1} parent=0 // pred_region
    _
  $region5: #{vit_forward.1} parent=0 // pred_fallthru
    _
  // Predicated region
  $region6: #{vit_forward.1} parent=0 // pred_check
    _
  $region7: #{vit_forward.1} parent=0 // pred_check_branch
    %69 = sbr.rel (0) target = $region9
  $region8: #{vit_forward.1} parent=0 // pred_region
    _
  $region9: #{vit_forward.1} parent=0 // pred_fallthru
    _
  // Predicated region
  $region10: #{vit_forward.1} parent=0 // pred_check
    _
  $region11: #{vit_forward.1} parent=0 // pred_check_branch
    %71 = sbr.rel (0) target = $region13
  $region12: #{vit_forward.1} parent=0 // pred_region
    _
  $region13: #{vit_forward.1} parent=0 // pred_fallthru
    _
  // Predicated region
  $region14: #{vit_forward.1} parent=0 // pred_check
    _
  $region15: #{vit_forward.1} parent=0 // pred_check_branch
    %73 = sbr.rel (0) target = $region17
  $region16: #{vit_forward.1} parent=0 // pred_region
    _
  $region17: #{vit_forward.1} parent=0 // pred_fallthru
    _
  // Predicated region
  $region18: #{vit_forward.1} parent=0 // pred_check
    _
  $region19: #{vit_forward.1} parent=0 // pred_check_branch
    %75 = sbr.rel (0) target = $region21
  $region20: #{vit_forward.1} parent=0 // pred_region
    _
  $region21: #{vit_forward.1} parent=0 // pred_fallthru
    _
  // Predicated region
  $region22: #{vit_forward.1} parent=0 // pred_check
    _
  $region23: #{vit_forward.1} parent=0 // pred_check_branch
    %77 = sbr.rel (0) target = $region25
  $region24: #{vit_forward.1} parent=0 // pred_region
    _
  $region25: #{vit_forward.1} parent=0 // pred_fallthru
    _
  // Predicated region
  $region26: #{vit_forward.1} parent=0 // pred_check
    _
  $region27: #{vit_forward.1} parent=0 // pred_check_branch
    %79 = sbr.rel (0) target = $region29
  $region28: #{vit_forward.1} parent=0 // pred_region
    _
  $region29: #{vit_forward.1} parent=0 // pred_fallthru
    _
  // Predicated region
  $region30: #{vit_forward.1} parent=0 // pred_check
    _
  $region31: #{vit_forward.1} parent=0 // pred_check_branch
    %81 = sbr.rel (0) target = $region33
  $region32: #{vit_forward.1} parent=0 // pred_region
    _
  $region33: #{vit_forward.1} parent=0 // pred_fallthru
    _
  // Predicated region
  $region34: #{vit_forward.1} parent=0 // pred_check
    _
  $region35: #{vit_forward.1} parent=0 // pred_check_branch
    %83 = sbr.rel (0) target = $region37
  $region36: #{vit_forward.1} parent=0 // pred_region
    _
  $region37: #{vit_forward.1} parent=0 // pred_fallthru
    _
  // Predicated region
  $region38: #{vit_forward.1} parent=0 // pred_check
    _
  $region39: #{vit_forward.1} parent=0 // pred_check_branch
    %85 = sbr.rel (0) target = $region41
  $region40: #{vit_forward.1} parent=0 // pred_region
    _
  $region41: #{vit_forward.1} parent=0 // pred_fallthru
    _
  // Predicated region
  $region42: #{vit_forward.1} parent=0 // pred_check
    _
  $region43: #{vit_forward.1} parent=0 // pred_check_branch
    %87 = sbr.rel (0) target = $region45
  $region44: #{vit_forward.1} parent=0 // pred_region
    _
  $region45: #{vit_forward.1} parent=0 // pred_fallthru
    _
  // Predicated region
  $region46: #{vit_forward.1} parent=0 // pred_check
    _
  $region47: #{vit_forward.1} parent=0 // pred_check_branch
    %89 = sbr.rel (0) target = $region49
  $region48: #{vit_forward.1} parent=0 // pred_region
    _
  $region49: #{vit_forward.1} parent=0 // pred_fallthru
    _
  // Predicated region
  $region50: #{vit_forward.1} parent=0 // pred_check
    _
  $region51: #{vit_forward.1} parent=0 // pred_check_branch
    %91 = sbr.rel (0) target = $region53
  $region52: #{vit_forward.1} parent=0 // pred_region
    _
  $region53: #{vit_forward.1} parent=0 // pred_fallthru
    _
  // Predicated region
  $region54: #{vit_forward.1} parent=0 // pred_check
    _
  $region55: #{vit_forward.1} parent=0 // pred_check_branch
    %93 = sbr.rel (0) target = $region57
  $region56: #{vit_forward.1} parent=0 // pred_region
    _
  $region57: #{vit_forward.1} parent=0 // pred_fallthru
    _
  // Predicated region
  $region58: #{vit_forward.1} parent=0 // pred_check
    _
  $region59: #{vit_forward.1} parent=0 // pred_check_branch
    %95 = sbr.rel (0) target = $region61
  $region60: #{vit_forward.1} parent=0 // pred_region
    _
  $region61: #{vit_forward.1} parent=0 // pred_fallthru
    _
  // Predicated region
  $region62: #{vit_forward.1} parent=0 // pred_check
    _
  $region63: #{vit_forward.1} parent=0 // pred_check_branch
    %97 = sbr.rel (0) target = $region65
  $region64: #{vit_forward.1} parent=0 // pred_region
    _
  $region65: #{vit_forward.1} parent=0 // pred_fallthru
    _
  // Predicated region
  $region66: #{vit_forward.1} parent=0 // pred_check
    _
  $region67: #{vit_forward.1} parent=0 // pred_check_branch
    %99 = sbr.rel (0) target = $region69
  $region68: #{vit_forward.1} parent=0 // pred_region
    _
  $region69: #{vit_forward.1} parent=0 // pred_fallthru
    _
  // Predicated region
  $region70: #{vit_forward.1} parent=0 // pred_check
    _
  $region71: #{vit_forward.1} parent=0 // pred_check_branch
    %101 = sbr.rel (0) target = $region73
  $region72: #{vit_forward.1} parent=0 // pred_region
    _
  $region73: #{vit_forward.1} parent=0 // pred_fallthru
    _
  // Predicated region
  $region74: #{vit_forward.1} parent=0 // pred_check
    _
  $region75: #{vit_forward.1} parent=0 // pred_check_branch
    %103 = sbr.rel (0) target = $region77
  $region76: #{vit_forward.1} parent=0 // pred_region
    _
  $region77: #{vit_forward.1} parent=0 // pred_fallthru
    _
  // Predicated region
  $region78: #{vit_forward.1} parent=0 // pred_check
    _
  $region79: #{vit_forward.1} parent=0 // pred_check_branch
    %105 = sbr.rel (0) target = $region81
  $region80: #{vit_forward.1} parent=0 // pred_region
    _
  $region81: #{vit_forward.1} parent=0 // pred_fallthru
    _
  // Predicated region
  $region82: #{vit_forward.1} parent=0 // pred_check
    _
  $region83: #{vit_forward.1} parent=0 // pred_check_branch
    %107 = sbr.rel (0) target = $region85
  $region84: #{vit_forward.1} parent=0 // pred_region
    _
  $region85: #{vit_forward.1} parent=0 // pred_fallthru
    _
  // Predicated region
  $region86: #{vit_forward.1} parent=0 // pred_check
    _
  $region87: #{vit_forward.1} parent=0 // pred_check_branch
    %109 = sbr.rel (0) target = $region89
  $region88: #{vit_forward.1} parent=0 // pred_region
    _
  $region89: #{vit_forward.1} parent=0 // pred_fallthru
    _
  // Predicated region
  $region90: #{vit_forward.1} parent=0 // pred_check
    _
  $region91: #{vit_forward.1} parent=0 // pred_check_branch
    %111 = sbr.rel (0) target = $region93
  $region92: #{vit_forward.1} parent=0 // pred_region
    _
  $region93: #{vit_forward.1} parent=0 // pred_fallthru
    _
  // Predicated region
  $region94: #{vit_forward.1} parent=0 // pred_check
    _
  $region95: #{vit_forward.1} parent=0 // pred_check_branch
    %113 = sbr.rel (0) target = $region97
  $region96: #{vit_forward.1} parent=0 // pred_region
    _
  $region97: #{vit_forward.1} parent=0 // pred_fallthru
    _
  // Predicated region
  $region98: #{vit_forward.1} parent=0 // pred_check
    _
  $region99: #{vit_forward.1} parent=0 // pred_check_branch
    %115 = sbr.rel (0) target = $region101
  $region100: #{vit_forward.1} parent=0 // pred_region
    _
  $region101: #{vit_forward.1} parent=0 // pred_fallthru
    _
  // Predicated region
  $region102: #{vit_forward.1} parent=0 // pred_check
    _
  $region103: #{vit_forward.1} parent=0 // pred_check_branch
    %117 = sbr.rel (0) target = $region105
  $region104: #{vit_forward.1} parent=0 // pred_region
    _
  $region105: #{vit_forward.1} parent=0 // pred_fallthru
    _
  // Predicated region
  $region106: #{vit_forward.1} parent=0 // pred_check
    _
  $region107: #{vit_forward.1} parent=0 // pred_check_branch
    %119 = sbr.rel (0) target = $region109
  $region108: #{vit_forward.1} parent=0 // pred_region
    _
  $region109: #{vit_forward.1} parent=0 // pred_fallthru
    _
  // Predicated region
  $region110: #{vit_forward.1} parent=0 // pred_check
    _
  $region111: #{vit_forward.1} parent=0 // pred_check_branch
    %121 = sbr.rel (0) target = $region113
  $region112: #{vit_forward.1} parent=0 // pred_region
    _
  $region113: #{vit_forward.1} parent=0 // pred_fallthru
    _
  // Predicated region
  $region114: #{vit_forward.1} parent=0 // pred_check
    _
  $region115: #{vit_forward.1} parent=0 // pred_check_branch
    %123 = sbr.rel (0) target = $region117
  $region116: #{vit_forward.1} parent=0 // pred_region
    _
  $region117: #{vit_forward.1} parent=0 // pred_fallthru
    _
  // Predicated region
  $region118: #{vit_forward.1} parent=0 // pred_check
    _
  $region119: #{vit_forward.1} parent=0 // pred_check_branch
    %125 = sbr.rel (0) target = $region121
  $region120: #{vit_forward.1} parent=0 // pred_region
    _
  $region121: #{vit_forward.1} parent=0 // pred_fallthru
    _
  %v127 = vld [vmem:[%s1] sm:$0xff]
  %v128 = vld [vmem:[%s1 + $0x8] sm:$0xff]
  %v129 = vld [vmem:[%s1 + $0x10] sm:$0x3]
  %v130 = vld [vmem:[%s1 + $0x18] sm:$0x3]
  %v131 = vpack.c.bf16 %v129, %v127
  %v132 = vpack.c.bf16 %v130, %v128
  %v133 = vld [vmem:[%s3] sm:$0xf]
  %v134 = vld [vmem:[%s3 + $0x4] sm:$0xf]
  %v135 = vld [vmem:[%s3 + $0x8] sm:$0xf]
  %v136 = vld [vmem:[%s3 + $0xc] sm:$0xf]
  %v137 = vld [vmem:[%s3 + $0x10] sm:$0xf]
  %v138 = vld [vmem:[%s3 + $0x14] sm:$0xf]
  %v139 = vld [vmem:[%s3 + $0x18] sm:$0xf]
  %v140 = vld [vmem:[%s3 + $0x1c] sm:$0xf]
  %v141 = vld [vmem:[%s3 + $0x20] sm:$0xf]
  %v142 = vld [vmem:[%s3 + $0x24] sm:$0xf]
  %v143 = vld [vmem:[%s3 + $0x28] sm:$0xf]
  %v144 = vld [vmem:[%s3 + $0x2c] sm:$0xf]
  %v145 = vld [vmem:[%s3 + $0x30] sm:$0xf]
  %v146 = vld [vmem:[%s3 + $0x34] sm:$0xf]
  %v147 = vld [vmem:[%s3 + $0x38] sm:$0xf]
  %v148 = vld [vmem:[%s3 + $0x3c] sm:$0xf]
  %v149 = vld [vmem:[%s3 + $0x40] sm:$0xf]
  %v150 = vld [vmem:[%s3 + $0x44] sm:$0xf]
  %v151 = vld [vmem:[%s3 + $0x48] sm:$0xf]
  %v152 = vld [vmem:[%s3 + $0x4c] sm:$0xf]
  %v153 = vld [vmem:[%s3 + $0x50] sm:$0xf]
  %v154 = vld [vmem:[%s3 + $0x54] sm:$0xf]
  %v155 = vld [vmem:[%s3 + $0x58] sm:$0xf]
  %v156 = vld [vmem:[%s3 + $0x5c] sm:$0xf]
  %v157 = vld [vmem:[%s5] sm:$0xff]
  %v158 = vld [vmem:[%s5 + $0x8] sm:$0x3]
  %v183 = vunpack.c.l.b16 %v133
  %v184 = vunpack.c.l.b16 %v134
  %v185 = vunpack.c.l.b16 %v135
  %v186 = vunpack.c.l.b16 %v136
  %v187 = vunpack.c.l.b16 %v137
  %v188 = vunpack.c.l.b16 %v138
  %v189 = vunpack.c.l.b16 %v139
  %v190 = vunpack.c.l.b16 %v140
  %v191 = vunpack.c.l.b16 %v141
  %v192 = vunpack.c.l.b16 %v142
  %v193 = vunpack.c.l.b16 %v143
  %v194 = vunpack.c.l.b16 %v144
  %v195 = vunpack.c.l.b16 %v145
  %v196 = vunpack.c.l.b16 %v146
  %v197 = vunpack.c.l.b16 %v147
  %v198 = vunpack.c.l.b16 %v148
  %v199 = vunpack.c.l.b16 %v149
  %v200 = vunpack.c.l.b16 %v150
  %v201 = vunpack.c.l.b16 %v151
  %v202 = vunpack.c.l.b16 %v152
  %v203 = vunpack.c.l.b16 %v153
  %v204 = vunpack.c.l.b16 %v154
  %v205 = vunpack.c.l.b16 %v155
  %v206 = vunpack.c.l.b16 %v156
  %v207 = vpack.c.b16 %v184, %v183
  %v208 = vpack.c.b16 %v186, %v185
  %v209 = vpack.c.b16 %v188, %v187
  %v210 = vpack.c.b16 %v190, %v189
  %v211 = vpack.c.b16 %v192, %v191
  %v212 = vpack.c.b16 %v194, %v193
  %v213 = vpack.c.b16 %v196, %v195
  %v214 = vpack.c.b16 %v198, %v197
  %v215 = vpack.c.b16 %v200, %v199
  %v216 = vpack.c.b16 %v202, %v201
  %v217 = vpack.c.b16 %v204, %v203
  %v218 = vpack.c.b16 %v206, %v205
  %vm231 = vcmask 523264
  %v233 = vsel %vm231, %v132, 0
  %235 = vmatpush.bf16.msra.mxu0 %v214
  %236 = vmatpush.bf16.msra.mxu0 %v213
  %237 = vmatpush.bf16.msra.mxu0 %v212
  %238 = vmatpush.bf16.msra.mxu0 %v211
  %239 = vmatpush.bf16.msra.mxu0 %v210
  %240 = vmatpush.bf16.msra.mxu0 %v209
  %241 = vmatpush.bf16.msra.mxu0 %v208
  %242 = vmatpush.bf16.msra.mxu0 %v207
  %243 = vmatmul.bf16.gmra.mxu0 %v131
  %v244 = vpop.f32.mrf.mxu0
  %v245 = vadd.f32 %v157, %v244
  %v246 = vpop.f32.mrf.mxu0
  %v247 = vadd.f32 %v158, %v246
  %248 = vdwg.mxu0
  %249 = vmatpush.bf16.msra.mxu0 0
  %250 = vmatpush.bf16.msra.mxu0 0
  %251 = vmatpush.bf16.msra.mxu0 0
  %252 = vmatpush.bf16.msra.mxu0 0
  %253 = vmatpush.bf16.msra.mxu0 %v218
  %254 = vmatpush.bf16.msra.mxu0 %v217
  %255 = vmatpush.bf16.msra.mxu0 %v216
  %256 = vmatpush.bf16.msra.mxu0 %v215
  %257 = vmatmul.bf16.gmra.mxu0 %v233
  %v258 = vpop.f32.mrf.mxu0
  %v259 = vadd.f32 %v245, %v258
  %v260 = vpop.f32.mrf.mxu0
  %v261 = vadd.f32 %v247, %v260
  %262 = vdwg.mxu0
  %v263 = vld [vmem:[%s7] sm:$0xff]
  %v264 = vld [vmem:[%s7 + $0x8] sm:$0x3]
  %v265 = vld [vmem:[%s9] sm:$0x1]
  %v266 = vld [vmem:[%s11] sm:$0x1]
  %267 = vadd.xlane.f32.xlu0 %v259
  %v268 = vpop.xlane.xlu0 %267
  %vm269 = vcmask 1041408
  %v270 = vsel %vm269, %v261, 0.0
  %271 = vadd.xlane.f32.xlu0 %v270
  %v272 = vpop.xlane.xlu0 %271
  %v273 = vmul.f32 %v268, 0.03125
  %v274 = vmul.f32 %v272, 0.03125
  %v275 = vsub.f32 %v259, %v273
  %v276 = vsub.f32 %v261, %v274
  %v277 = vmul.f32 %v275, %v275
  %v278 = vmul.f32 %v276, %v276
  %279 = vadd.xlane.f32.xlu0 %v277
  %v280 = vpop.xlane.xlu0 %279
  %v281 = vsel %vm269, %v278, 0.0
  %282 = vadd.xlane.f32.xlu0 %v281
  %v283 = vpop.xlane.xlu0 %282
  %v284 = vmul.f32 %v273, 96.0
  %v285 = vmul.f32 %v274, 96.0
  %v286 = vmul.f32 %v284, %v273
  %v287 = vmul.f32 %v285, %v274
  %v288 = vsub.f32 %v280, %v286
  %v289 = vsub.f32 %v283, %v287
  %v290 = vmul.f32 %v288, 0.03125
  %v291 = vmul.f32 %v289, 0.03125
  %v292 = vadd.f32 %v290, 1e-05
  %v293 = vadd.f32 %v291, 1e-05
  %v294 = vrsqrt.pop %v292
  %v295 = vmul.f32 %v294, %v292
  %v296 = vmul.f32 %v295, %v294
  %v297 = vmul.f32 0.5, %v296
  %v298 = vsub.f32 1.5, %v297
  %v299 = vmul.f32 %v294, %v298
  %vm300 = vweird.f32 %v292
  %vm301 = vweird.f32 %v294
  %vm302 = vmor %vm300, %vm301
  %v303 = vsel %vm302, %v294, %v299
  %v304 = vrsqrt.pop %v293
  %v305 = vmul.f32 %v304, %v293
  %v306 = vmul.f32 %v305, %v304
  %v307 = vmul.f32 0.5, %v306
  %v308 = vsub.f32 1.5, %v307
  %v309 = vmul.f32 %v304, %v308
  %vm310 = vweird.f32 %v293
  %vm311 = vweird.f32 %v304
  %vm312 = vmor %vm310, %vm311
  %v313 = vsel %vm312, %v304, %v309
  %v314 = vmul.f32 %v275, %v303
  %v315 = vmul.f32 %v276, %v313
  %v317 = vperm.slane %v265, 0
  %v319 = vmul.f32 %v314, %v317
  %v320 = vmul.f32 %v315, %v317
  %v322 = vperm.slane %v266, 0
  %v324 = vadd.f32 %v319, %v322
  %v325 = vadd.f32 %v320, %v322
  %v326 = vpack.c.bf16 %v325, %v324
  %v327 = vld [vmem:[%s13] sm:$0xf]
  %v328 = vld [vmem:[%s13 + $0x4] sm:$0xf]
  %v329 = vld [vmem:[%s13 + $0x8] sm:$0xf]
  %v330 = vld [vmem:[%s13 + $0xc] sm:$0xf]
  %v331 = vld [vmem:[%s13 + $0x10] sm:$0xf]
  %v332 = vld [vmem:[%s13 + $0x14] sm:$0xf]
  %v333 = vld [vmem:[%s13 + $0x18] sm:$0xf]
  %v334 = vld [vmem:[%s13 + $0x1c] sm:$0xf]
  %v335 = vld [vmem:[%s13 + $0x20] sm:$0xf]
  %v336 = vld [vmem:[%s13 + $0x24] sm:$0xf]
  %v337 = vld [vmem:[%s13 + $0x28] sm:$0xf]
  %v338 = vld [vmem:[%s13 + $0x2c] sm:$0xf]
  %v339 = vld [vmem:[%s13 + $0x30] sm:$0xf]
  %v340 = vld [vmem:[%s13 + $0x34] sm:$0xf]
  %v341 = vld [vmem:[%s13 + $0x38] sm:$0xf]
  %v342 = vld [vmem:[%s13 + $0x3c] sm:$0xf]
  %v359 = vunpack.c.l.b16 %v327
  %v360 = vunpack.c.l.b16 %v328
  %v361 = vunpack.c.l.b16 %v329
  %v362 = vunpack.c.l.b16 %v330
  %v363 = vunpack.c.l.b16 %v331
  %v364 = vunpack.c.l.b16 %v332
  %v365 = vunpack.c.l.b16 %v333
  %v366 = vunpack.c.l.b16 %v334
  %v367 = vunpack.c.l.b16 %v335
  %v368 = vunpack.c.l.b16 %v336
  %v369 = vunpack.c.l.b16 %v337
  %v370 = vunpack.c.l.b16 %v338
  %v371 = vunpack.c.l.b16 %v339
  %v372 = vunpack.c.l.b16 %v340
  %v373 = vunpack.c.l.b16 %v341
  %v374 = vunpack.c.l.b16 %v342
  %v375 = vpack.c.b16 %v360, %v359
  %v376 = vpack.c.b16 %v362, %v361
  %v377 = vpack.c.b16 %v364, %v363
  %v378 = vpack.c.b16 %v366, %v365
  %v379 = vpack.c.b16 %v368, %v367
  %v380 = vpack.c.b16 %v370, %v369
  %v381 = vpack.c.b16 %v372, %v371
  %v382 = vpack.c.b16 %v374, %v373
  %391 = vmatpush.bf16.msra.mxu0 %v382
  %392 = vmatpush.bf16.msra.mxu0 %v381
  %393 = vmatpush.bf16.msra.mxu0 %v380
  %394 = vmatpush.bf16.msra.mxu0 %v379
  %395 = vmatpush.bf16.msra.mxu0 %v378
  %396 = vmatpush.bf16.msra.mxu0 %v377
  %397 = vmatpush.bf16.msra.mxu0 %v376
  %398 = vmatpush.bf16.msra.mxu0 %v375
  %399 = vmatmul.bf16.gmra.mxu0 %v326
  %v400 = vpop.f32.mrf.mxu0
  %v401 = vadd.f32 0.0, %v400
  %v402 = vpop.f32.mrf.mxu0
  %v403 = vadd.f32 0.0, %v402
  %404 = vdwg.mxu0
  %v405 = vld [vmem:[%s15] sm:$0x1]
  %v407 = vperm.slane %v405, 0
  %v409 = vadd.f32 %v401, %v407
  %v410 = vadd.f32 %v403, %v407
  %v411 = vmul.f32 %v409, 0.35355338
  %v412 = vmul.f32 %v410, 0.35355338
  %v413 = vld [vmem:[%s17] sm:$0x1]
  %v415 = vperm.slane %v413, 0
  %416 = vrot.lane.b32.xlu0 %v415, 64
  %v417 = vpop.permute.xlu0 %416
  %v419 = vadd.f32 %v401, %v417
  %v420 = vadd.f32 %v403, %v417
  %v421 = vpack.c.bf16 %v412, %v411
  %v422 = vpack.c.bf16 %v403, %v401
  %424 = vrot.lane.b32.xlu0 %v422, 96
  %v425 = vpop.permute.xlu0 %424
  %vm426 = vcmask 64512
  %v428 = vsel %vm426, %v421, 0
  %v431 = vsel %vm426, %v425, 0
  %433 = vmatpush.bf16.xpose.msra.mxu0 0
  %434 = vmatpush.bf16.xpose.msra.mxu0 0
  %435 = vmatpush.bf16.xpose.msra.mxu0 0
  %436 = vmatpush.bf16.xpose.msra.mxu0 0
  %437 = vmatpush.bf16.xpose.msra.mxu0 0
  %438 = vmatpush.bf16.xpose.msra.mxu0 0
  %439 = vmatpush.bf16.xpose.msra.mxu0 0
  %440 = vmatpush.bf16.xpose.msra.mxu0 %v431
  %441 = vmatmul.bf16.gmra.mxu0 %v428
  %v442 = vpop.f32.mrf.mxu0
  %v443 = vadd.f32 %v263, %v442
  %v444 = vpop.f32.mrf.mxu0
  %v445 = vadd.f32 %v264, %v444
  %446 = vdwg.mxu0
  %vm447 = vcmask 80896
  %v448 = vsel %vm447, %v443, -inf
  %449 = vmax.xlane.f32.xlu0 %v448
  %v450 = vpop.xlane.xlu0 %449
  %vm451 = vcmask 74752
  %v452 = vsel %vm451, %v445, -inf
  %453 = vmax.xlane.f32.xlu0 %v452
  %v454 = vpop.xlane.xlu0 %453
  %v455 = vsub.f32 %v443, %v450
  %v456 = vsub.f32 %v445, %v454
  %v457 = vmul.f32 %v455, 1.442695
  %v458 = vpow.pop %v457
  %v459 = vmul.f32 %v456, 1.442695
  %v460 = vpow.pop %v459
  %v461 = vsel %vm447, %v458, 0.0
  %462 = vadd.xlane.f32.xlu0 %v461
  %v463 = vpop.xlane.xlu0 %462
  %v464 = vsel %vm451, %v460, 0.0
  %465 = vadd.xlane.f32.xlu0 %v464
  %v466 = vpop.xlane.xlu0 %465
  %v467 = vrcp.pop %v463
  %v468 = vrcp.pop %v466
  %v469 = vmul.f32 %v458, %v467
  %v470 = vmul.f32 %v460, %v468
  %v471 = vpack.c.bf16 %v470, %v469
  %v472 = vpack.c.bf16 %v420, %v419
  %474 = vrot.lane.b32.xlu0 %v472, 64
  %v475 = vpop.permute.xlu0 %474
  %v477 = vsel %vm447, %v471, 0
  %vm479 = vcmask 1044480
  %v481 = vsel %vm479, %v475, 0
  %483 = vmatpush.bf16.msra.mxu0 0
  %484 = vmatpush.bf16.msra.mxu0 0
  %485 = vmatpush.bf16.msra.mxu0 0
  %486 = vmatpush.bf16.msra.mxu0 0
  %487 = vmatpush.bf16.msra.mxu0 0
  %488 = vmatpush.bf16.msra.mxu0 0
  %489 = vmatpush.bf16.msra.mxu0 0
  %490 = vmatpush.bf16.msra.mxu0 %v481
  %491 = vmatmul.bf16.gmra.mxu0 %v477
  %v492 = vpop.f32.mrf.mxu0
  %v493 = vadd.f32 0.0, %v492
  %v494 = vpop.f32.mrf.mxu0
  %v495 = vadd.f32 0.0, %v494
  %496 = vdwg.mxu0
  %498 = vrot.lane.b32.xlu0 %v421, 120
  %v499 = vpop.permute.xlu0 %498
  %500 = vrot.lane.b32.xlu0 %v422, 88
  %v501 = vpop.permute.xlu0 %500
  %v503 = vsel %vm426, %v499, 0
  %v506 = vsel %vm426, %v501, 0
  %508 = vmatpush.bf16.xpose.msra.mxu0 0
  %509 = vmatpush.bf16.xpose.msra.mxu0 0
  %510 = vmatpush.bf16.xpose.msra.mxu0 0
  %511 = vmatpush.bf16.xpose.msra.mxu0 0
  %512 = vmatpush.bf16.xpose.msra.mxu0 0
  %513 = vmatpush.bf16.xpose.msra.mxu0 0
  %514 = vmatpush.bf16.xpose.msra.mxu0 0
  %515 = vmatpush.bf16.xpose.msra.mxu0 %v506
  %516 = vmatmul.bf16.gmra.mxu0 %v503
  %v517 = vpop.f32.mrf.mxu0
  %v518 = vadd.f32 %v263, %v517
  %v519 = vpop.f32.mrf.mxu0
  %v520 = vadd.f32 %v264, %v519
  %521 = vdwg.mxu0
  %v522 = vsel %vm447, %v518, -inf
  %523 = vmax.xlane.f32.xlu0 %v522
  %v524 = vpop.xlane.xlu0 %523
  %v525 = vsel %vm451, %v520, -inf
  %526 = vmax.xlane.f32.xlu0 %v525
  %v527 = vpop.xlane.xlu0 %526
  %v528 = vsub.f32 %v518, %v524
  %v529 = vsub.f32 %v520, %v527
  %v530 = vmul.f32 %v528, 1.442695
  %v531 = vpow.pop %v530
  %v532 = vmul.f32 %v529, 1.442695
  %v533 = vpow.pop %v532
  %v534 = vsel %vm447, %v531, 0.0
  %535 = vadd.xlane.f32.xlu0 %v534
  %v536 = vpop.xlane.xlu0 %535
  %v537 = vsel %vm451, %v533, 0.0
  %538 = vadd.xlane.f32.xlu0 %v537
  %v539 = vpop.xlane.xlu0 %538
  %v540 = vrcp.pop %v536
  %v541 = vrcp.pop %v539
  %v542 = vmul.f32 %v531, %v540
  %v543 = vmul.f32 %v533, %v541
  %v544 = vpack.c.bf16 %v543, %v542
  %545 = vrot.lane.b32.xlu0 %v472, 56
  %v546 = vpop.permute.xlu0 %545
  %v548 = vsel %vm447, %v544, 0
  %v551 = vsel %vm479, %v546, 0
  %553 = vmatpush.bf16.msra.mxu0 0
  %554 = vmatpush.bf16.msra.mxu0 0
  %555 = vmatpush.bf16.msra.mxu0 0
  %556 = vmatpush.bf16.msra.mxu0 0
  %557 = vmatpush.bf16.msra.mxu0 0
  %558 = vmatpush.bf16.msra.mxu0 0
  %559 = vmatpush.bf16.msra.mxu0 0
  %560 = vmatpush.bf16.msra.mxu0 %v551
  %561 = vmatmul.bf16.gmra.mxu0 %v548
  %v562 = vpop.f32.mrf.mxu0
  %v563 = vadd.f32 0.0, %v562
  %v564 = vpop.f32.mrf.mxu0
  %v565 = vadd.f32 0.0, %v564
  %566 = vdwg.mxu0
  %567 = vrot.lane.b32.xlu0 %v421, 112
  %v568 = vpop.permute.xlu0 %567
  %569 = vrot.lane.b32.xlu0 %v422, 80
  %v570 = vpop.permute.xlu0 %569
  %v572 = vsel %vm426, %v568, 0
  %v575 = vsel %vm426, %v570, 0
  %577 = vmatpush.bf16.xpose.msra.mxu0 0
  %578 = vmatpush.bf16.xpose.msra.mxu0 0
  %579 = vmatpush.bf16.xpose.msra.mxu0 0
  %580 = vmatpush.bf16.xpose.msra.mxu0 0
  %581 = vmatpush.bf16.xpose.msra.mxu0 0
  %582 = vmatpush.bf16.xpose.msra.mxu0 0
  %583 = vmatpush.bf16.xpose.msra.mxu0 0
  %584 = vmatpush.bf16.xpose.msra.mxu0 %v575
  %585 = vmatmul.bf16.gmra.mxu0 %v572
  %v586 = vpop.f32.mrf.mxu0
  %v587 = vadd.f32 %v263, %v586
  %v588 = vpop.f32.mrf.mxu0
  %v589 = vadd.f32 %v264, %v588
  %590 = vdwg.mxu0
  %v591 = vsel %vm447, %v587, -inf
  %592 = vmax.xlane.f32.xlu0 %v591
  %v593 = vpop.xlane.xlu0 %592
  %v594 = vsel %vm451, %v589, -inf
  %595 = vmax.xlane.f32.xlu0 %v594
  %v596 = vpop.xlane.xlu0 %595
  %v597 = vsub.f32 %v587, %v593
  %v598 = vsub.f32 %v589, %v596
  %v599 = vmul.f32 %v597, 1.442695
  %v600 = vpow.pop %v599
  %v601 = vmul.f32 %v598, 1.442695
  %v602 = vpow.pop %v601
  %v603 = vsel %vm447, %v600, 0.0
  %604 = vadd.xlane.f32.xlu0 %v603
  %v605 = vpop.xlane.xlu0 %604
  %v606 = vsel %vm451, %v602, 0.0
  %607 = vadd.xlane.f32.xlu0 %v606
  %v608 = vpop.xlane.xlu0 %607
  %v609 = vrcp.pop %v605
  %v610 = vrcp.pop %v608
  %v611 = vmul.f32 %v600, %v609
  %v612 = vmul.f32 %v602, %v610
  %v613 = vpack.c.bf16 %v612, %v611
  %614 = vrot.lane.b32.xlu0 %v472, 48
  %v615 = vpop.permute.xlu0 %614
  %v617 = vsel %vm447, %v613, 0
  %v620 = vsel %vm479, %v615, 0
  %622 = vmatpush.bf16.msra.mxu0 0
  %623 = vmatpush.bf16.msra.mxu0 0
  %624 = vmatpush.bf16.msra.mxu0 0
  %625 = vmatpush.bf16.msra.mxu0 0
  %626 = vmatpush.bf16.msra.mxu0 0
  %627 = vmatpush.bf16.msra.mxu0 0
  %628 = vmatpush.bf16.msra.mxu0 0
  %629 = vmatpush.bf16.msra.mxu0 %v620
  %630 = vmatmul.bf16.gmra.mxu0 %v617
  %v631 = vpop.f32.mrf.mxu0
  %v632 = vadd.f32 0.0, %v631
  %v633 = vpop.f32.mrf.mxu0
  %v634 = vadd.f32 0.0, %v633
  %635 = vdwg.mxu0
  %636 = vrot.lane.b32.xlu0 %v421, 104
  %v637 = vpop.permute.xlu0 %636
  %638 = vrot.lane.b32.xlu0 %v422, 72
  %v639 = vpop.permute.xlu0 %638
  %v641 = vsel %vm426, %v637, 0
  %v644 = vsel %vm426, %v639, 0
  %646 = vmatpush.bf16.xpose.msra.mxu0 0
  %647 = vmatpush.bf16.xpose.msra.mxu0 0
  %648 = vmatpush.bf16.xpose.msra.mxu0 0
  %649 = vmatpush.bf16.xpose.msra.mxu0 0
  %650 = vmatpush.bf16.xpose.msra.mxu0 0
  %651 = vmatpush.bf16.xpose.msra.mxu0 0
  %652 = vmatpush.bf16.xpose.msra.mxu0 0
  %653 = vmatpush.bf16.xpose.msra.mxu0 %v644
  %654 = vmatmul.bf16.gmra.mxu0 %v641
  %v655 = vpop.f32.mrf.mxu0
  %v656 = vadd.f32 %v263, %v655
  %v657 = vpop.f32.mrf.mxu0
  %v658 = vadd.f32 %v264, %v657
  %659 = vdwg.mxu0
  %v660 = vsel %vm447, %v656, -inf
  %661 = vmax.xlane.f32.xlu0 %v660
  %v662 = vpop.xlane.xlu0 %661
  %v663 = vsel %vm451, %v658, -inf
  %664 = vmax.xlane.f32.xlu0 %v663
  %v665 = vpop.xlane.xlu0 %664
  %v666 = vsub.f32 %v656, %v662
  %v667 = vsub.f32 %v658, %v665
  %v668 = vmul.f32 %v666, 1.442695
  %v669 = vpow.pop %v668
  %v670 = vmul.f32 %v667, 1.442695
  %v671 = vpow.pop %v670
  %v672 = vsel %vm447, %v669, 0.0
  %673 = vadd.xlane.f32.xlu0 %v672
  %v674 = vpop.xlane.xlu0 %673
  %v675 = vsel %vm451, %v671, 0.0
  %676 = vadd.xlane.f32.xlu0 %v675
  %v677 = vpop.xlane.xlu0 %676
  %v678 = vrcp.pop %v674
  %v679 = vrcp.pop %v677
  %v680 = vmul.f32 %v669, %v678
  %v681 = vmul.f32 %v671, %v679
  %v682 = vpack.c.bf16 %v681, %v680
  %683 = vrot.lane.b32.xlu0 %v472, 40
  %v684 = vpop.permute.xlu0 %683
  %v686 = vsel %vm447, %v682, 0
  %v689 = vsel %vm479, %v684, 0
  %691 = vmatpush.bf16.msra.mxu0 0
  %692 = vmatpush.bf16.msra.mxu0 0
  %693 = vmatpush.bf16.msra.mxu0 0
  %694 = vmatpush.bf16.msra.mxu0 0
  %695 = vmatpush.bf16.msra.mxu0 0
  %696 = vmatpush.bf16.msra.mxu0 0
  %697 = vmatpush.bf16.msra.mxu0 0
  %698 = vmatpush.bf16.msra.mxu0 %v689
  %699 = vmatmul.bf16.gmra.mxu0 %v686
  %v700 = vpop.f32.mrf.mxu0
  %v701 = vadd.f32 0.0, %v700
  %v702 = vpop.f32.mrf.mxu0
  %v703 = vadd.f32 0.0, %v702
  %704 = vdwg.mxu0
  %707 = vrot.lane.b32.xlu0 %v563, 8
  %v708 = vpop.permute.xlu0 %707
  %709 = vrot.lane.b32.xlu0 %v565, 8
  %v710 = vpop.permute.xlu0 %709
  %715 = vrot.lane.b32.xlu0 %v632, 16
  %v716 = vpop.permute.xlu0 %715
  %717 = vrot.lane.b32.xlu0 %v634, 16
  %v718 = vpop.permute.xlu0 %717
  %723 = vrot.lane.b32.xlu0 %v701, 24
  %v724 = vpop.permute.xlu0 %723
  %725 = vrot.lane.b32.xlu0 %v703, 24
  %v726 = vpop.permute.xlu0 %725
  %v729 = vsel %vm426, %v493, %v708
  %v730 = vsel %vm426, %v495, %v710
  %vm731 = vcmask 130048
  %v732 = vsel %vm731, %v729, %v716
  %v733 = vsel %vm731, %v730, %v718
  %vm734 = vcmask 195584
  %v735 = vsel %vm734, %v732, %v724
  %v736 = vsel %vm734, %v733, %v726
  %v737 = vpack.c.bf16 %v736, %v735
  %v738 = vld [vmem:[%s19] sm:$0xf]
  %v739 = vld [vmem:[%s19 + $0x4] sm:$0xf]
  %v740 = vld [vmem:[%s19 + $0x8] sm:$0xf]
  %v741 = vld [vmem:[%s19 + $0xc] sm:$0xf]
  %v746 = vunpack.c.l.b16 %v738
  %v747 = vunpack.c.l.b16 %v739
  %v748 = vunpack.c.l.b16 %v740
  %v749 = vunpack.c.l.b16 %v741
  %v750 = vpack.c.b16 %v747, %v746
  %v751 = vpack.c.b16 %v749, %v748
  %vm754 = vcmask 261120
  %v756 = vsel %vm754, %v737, 0
  %758 = vmatpush.bf16.msra.mxu0 0
  %759 = vmatpush.bf16.msra.mxu0 0
  %760 = vmatpush.bf16.msra.mxu0 0
  %761 = vmatpush.bf16.msra.mxu0 0
  %762 = vmatpush.bf16.msra.mxu0 0
  %763 = vmatpush.bf16.msra.mxu0 0
  %764 = vmatpush.bf16.msra.mxu0 %v751
  %765 = vmatpush.bf16.msra.mxu0 %v750
  %766 = vmatmul.bf16.gmra.mxu0 %v756
  %v767 = vpop.f32.mrf.mxu0
  %v768 = vadd.f32 0.0, %v767
  %v769 = vpop.f32.mrf.mxu0
  %v770 = vadd.f32 0.0, %v769
  %771 = vdwg.mxu0
  %v772 = vadd.f32 %v259, %v768
  %v773 = vadd.f32 %v261, %v770
  %v774 = vld [vmem:[%s21] sm:$0x1]
  %v776 = vperm.slane %v774, 0
  %v778 = vadd.f32 %v772, %v776
  %v779 = vadd.f32 %v773, %v776
  %v780 = vld [vmem:[%s23] sm:$0x1]
  %v781 = vld [vmem:[%s25] sm:$0x1]
  %782 = vadd.xlane.f32.xlu0 %v778
  %v783 = vpop.xlane.xlu0 %782
  %v784 = vsel %vm269, %v779, 0.0
  %785 = vadd.xlane.f32.xlu0 %v784
  %v786 = vpop.xlane.xlu0 %785
  %v787 = vmul.f32 %v783, 0.03125
  %v788 = vmul.f32 %v786, 0.03125
  %v789 = vsub.f32 %v778, %v787
  %v790 = vsub.f32 %v779, %v788
  %v791 = vmul.f32 %v789, %v789
  %v792 = vmul.f32 %v790, %v790
  %793 = vadd.xlane.f32.xlu0 %v791
  %v794 = vpop.xlane.xlu0 %793
  %v795 = vsel %vm269, %v792, 0.0
  %796 = vadd.xlane.f32.xlu0 %v795
  %v797 = vpop.xlane.xlu0 %796
  %v798 = vmul.f32 %v787, 96.0
  %v799 = vmul.f32 %v788, 96.0
  %v800 = vmul.f32 %v798, %v787
  %v801 = vmul.f32 %v799, %v788
  %v802 = vsub.f32 %v794, %v800
  %v803 = vsub.f32 %v797, %v801
  %v804 = vmul.f32 %v802, 0.03125
  %v805 = vmul.f32 %v803, 0.03125
  %v806 = vadd.f32 %v804, 1e-05
  %v807 = vadd.f32 %v805, 1e-05
  %v808 = vrsqrt.pop %v806
  %v809 = vmul.f32 %v808, %v806
  %v810 = vmul.f32 %v809, %v808
  %v811 = vmul.f32 0.5, %v810
  %v812 = vsub.f32 1.5, %v811
  %v813 = vmul.f32 %v808, %v812
  %vm814 = vweird.f32 %v806
  %vm815 = vweird.f32 %v808
  %vm816 = vmor %vm814, %vm815
  %v817 = vsel %vm816, %v808, %v813
  %v818 = vrsqrt.pop %v807
  %v819 = vmul.f32 %v818, %v807
  %v820 = vmul.f32 %v819, %v818
  %v821 = vmul.f32 0.5, %v820
  %v822 = vsub.f32 1.5, %v821
  %v823 = vmul.f32 %v818, %v822
  %vm824 = vweird.f32 %v807
  %vm825 = vweird.f32 %v818
  %vm826 = vmor %vm824, %vm825
  %v827 = vsel %vm826, %v818, %v823
  %v828 = vmul.f32 %v789, %v817
  %v829 = vmul.f32 %v790, %v827
  %v831 = vperm.slane %v780, 0
  %v833 = vmul.f32 %v828, %v831
  %v834 = vmul.f32 %v829, %v831
  %v836 = vperm.slane %v781, 0
  %v838 = vadd.f32 %v833, %v836
  %v839 = vadd.f32 %v834, %v836
  %v840 = vpack.c.bf16 %v839, %v838
  %v841 = vld [vmem:[%s27] sm:$0xf]
  %v842 = vld [vmem:[%s27 + $0x4] sm:$0xf]
  %v843 = vld [vmem:[%s27 + $0x8] sm:$0xf]
  %v844 = vld [vmem:[%s27 + $0xc] sm:$0xf]
  %v845 = vld [vmem:[%s27 + $0x10] sm:$0xf]
  %v846 = vld [vmem:[%s27 + $0x14] sm:$0xf]
  %v847 = vld [vmem:[%s27 + $0x18] sm:$0xf]
  %v848 = vld [vmem:[%s27 + $0x1c] sm:$0xf]
  %v849 = vld [vmem:[%s27 + $0x20] sm:$0xf]
  %v850 = vld [vmem:[%s27 + $0x24] sm:$0xf]
  %v851 = vld [vmem:[%s27 + $0x28] sm:$0xf]
  %v852 = vld [vmem:[%s27 + $0x2c] sm:$0xf]
  %v853 = vld [vmem:[%s27 + $0x30] sm:$0xf]
  %v854 = vld [vmem:[%s27 + $0x34] sm:$0xf]
  %v855 = vld [vmem:[%s27 + $0x38] sm:$0xf]
  %v856 = vld [vmem:[%s27 + $0x3c] sm:$0xf]
  %v857 = vld [vmem:[%s29] sm:$0x1]
  %v859 = vperm.slane %v857, 0
  %v877 = vunpack.c.l.b16 %v841
  %v878 = vunpack.c.l.b16 %v842
  %v879 = vunpack.c.l.b16 %v843
  %v880 = vunpack.c.l.b16 %v844
  %v881 = vunpack.c.l.b16 %v845
  %v882 = vunpack.c.l.b16 %v846
  %v883 = vunpack.c.l.b16 %v847
  %v884 = vunpack.c.l.b16 %v848
  %v885 = vunpack.c.l.b16 %v849
  %v886 = vunpack.c.l.b16 %v850
  %v887 = vunpack.c.l.b16 %v851
  %v888 = vunpack.c.l.b16 %v852
  %v889 = vunpack.c.l.b16 %v853
  %v890 = vunpack.c.l.b16 %v854
  %v891 = vunpack.c.l.b16 %v855
  %v892 = vunpack.c.l.b16 %v856
  %v893 = vpack.c.b16 %v878, %v877
  %v894 = vpack.c.b16 %v880, %v879
  %v895 = vpack.c.b16 %v882, %v881
  %v896 = vpack.c.b16 %v884, %v883
  %v897 = vpack.c.b16 %v886, %v885
  %v898 = vpack.c.b16 %v888, %v887
  %v899 = vpack.c.b16 %v890, %v889
  %v900 = vpack.c.b16 %v892, %v891
  %909 = vmatpush.bf16.msra.mxu0 %v900
  %910 = vmatpush.bf16.msra.mxu0 %v899
  %911 = vmatpush.bf16.msra.mxu0 %v898
  %912 = vmatpush.bf16.msra.mxu0 %v897
  %913 = vmatpush.bf16.msra.mxu0 %v896
  %914 = vmatpush.bf16.msra.mxu0 %v895
  %915 = vmatpush.bf16.msra.mxu0 %v894
  %916 = vmatpush.bf16.msra.mxu0 %v893
  %917 = vmatmul.bf16.gmra.mxu0 %v840
  %v918 = vpop.f32.mrf.mxu0
  %v919 = vadd.f32 %v859, %v918
  %v920 = vpop.f32.mrf.mxu0
  %v921 = vadd.f32 %v859, %v920
  %922 = vdwg.mxu0
  %v923 = vmul.f32 %v919, 0.5
  %v924 = vmul.f32 %v921, 0.5
  %v925 = vmul.f32 %v919, 0.70710677
  %v926 = vmul.f32 %v921, 0.70710677
  %vm927 = vcmp.ge.f32.partialorder %v925, 0.0
  %vm928 = vcmp.ge.f32.partialorder %v926, 0.0
  %v929 = vsel %vm927, 1.0, -1.0
  %v930 = vsel %vm928, 1.0, -1.0
  %v931 = vand.u32 2147483647, %v925
  %v932 = vand.u32 2147483647, %v926
  %v933 = vmul.f32 %v931, 0.3275911
  %v934 = vmul.f32 %v932, 0.3275911
  %v935 = vadd.f32 %v933, 1.0
  %v936 = vadd.f32 %v934, 1.0
  %v937 = vrcp.pop %v935
  %v938 = vrcp.pop %v936
  %v939 = vmul.f32 %v937, 1.0614054
  %v940 = vmul.f32 %v938, 1.0614054
  %v941 = vadd.f32 %v939, -1.4531521
  %v942 = vadd.f32 %v940, -1.4531521
  %v943 = vmul.f32 %v941, %v937
  %v944 = vmul.f32 %v942, %v938
  %v945 = vadd.f32 %v943, 1.4214138
  %v946 = vadd.f32 %v944, 1.4214138
  %v947 = vmul.f32 %v945, %v937
  %v948 = vmul.f32 %v946, %v938
  %v949 = vadd.f32 %v947, -0.28449672
  %v950 = vadd.f32 %v948, -0.28449672
  %v951 = vmul.f32 %v949, %v937
  %v952 = vmul.f32 %v950, %v938
  %v953 = vadd.f32 %v951, 0.2548296
  %v954 = vadd.f32 %v952, 0.2548296
  %v955 = vmul.f32 %v953, %v937
  %v956 = vmul.f32 %v954, %v938
  %v957 = vsub.f32 0.0, %v931
  %v958 = vsub.f32 0.0, %v932
  %v959 = vmul.f32 %v957, %v931
  %v960 = vmul.f32 %v958, %v932
  %v961 = vmul.f32 %v959, 1.442695
  %v962 = vpow.pop %v961
  %v963 = vmul.f32 %v960, 1.442695
  %v964 = vpow.pop %v963
  %v965 = vmul.f32 %v955, %v962
  %v966 = vmul.f32 %v956, %v964
  %v967 = vsub.f32 1.0, %v965
  %v968 = vsub.f32 1.0, %v966
  %v969 = vmul.f32 %v929, %v967
  %v970 = vmul.f32 %v930, %v968
  %v971 = vadd.f32 %v969, 1.0
  %v972 = vadd.f32 %v970, 1.0
  %v973 = vmul.f32 %v923, %v971
  %v974 = vmul.f32 %v924, %v972
  %v975 = vpack.c.bf16 %v974, %v973
  %v976 = vld [vmem:[%s31] sm:$0xf]
  %v977 = vld [vmem:[%s31 + $0x4] sm:$0xf]
  %v978 = vld [vmem:[%s31 + $0x8] sm:$0xf]
  %v979 = vld [vmem:[%s31 + $0xc] sm:$0xf]
  %v980 = vld [vmem:[%s31 + $0x10] sm:$0xf]
  %v981 = vld [vmem:[%s31 + $0x14] sm:$0xf]
  %v982 = vld [vmem:[%s31 + $0x18] sm:$0xf]
  %v983 = vld [vmem:[%s31 + $0x1c] sm:$0xf]
  %v984 = vld [vmem:[%s31 + $0x20] sm:$0xf]
  %v985 = vld [vmem:[%s31 + $0x24] sm:$0xf]
  %v986 = vld [vmem:[%s31 + $0x28] sm:$0xf]
  %v987 = vld [vmem:[%s31 + $0x2c] sm:$0xf]
  %v988 = vld [vmem:[%s31 + $0x30] sm:$0xf]
  %v989 = vld [vmem:[%s31 + $0x34] sm:$0xf]
  %v990 = vld [vmem:[%s31 + $0x38] sm:$0xf]
  %v991 = vld [vmem:[%s31 + $0x3c] sm:$0xf]
  %v992 = vld [vmem:[%s33] sm:$0x1]
  %v994 = vperm.slane %v992, 0
  %v1012 = vunpack.c.l.b16 %v976
  %v1013 = vunpack.c.l.b16 %v977
  %v1014 = vunpack.c.l.b16 %v978
  %v1015 = vunpack.c.l.b16 %v979
  %v1016 = vunpack.c.l.b16 %v980
  %v1017 = vunpack.c.l.b16 %v981
  %v1018 = vunpack.c.l.b16 %v982
  %v1019 = vunpack.c.l.b16 %v983
  %v1020 = vunpack.c.l.b16 %v984
  %v1021 = vunpack.c.l.b16 %v985
  %v1022 = vunpack.c.l.b16 %v986
  %v1023 = vunpack.c.l.b16 %v987
  %v1024 = vunpack.c.l.b16 %v988
  %v1025 = vunpack.c.l.b16 %v989
  %v1026 = vunpack.c.l.b16 %v990
  %v1027 = vunpack.c.l.b16 %v991
  %v1028 = vpack.c.b16 %v1013, %v1012
  %v1029 = vpack.c.b16 %v1015, %v1014
  %v1030 = vpack.c.b16 %v1017, %v1016
  %v1031 = vpack.c.b16 %v1019, %v1018
  %v1032 = vpack.c.b16 %v1021, %v1020
  %v1033 = vpack.c.b16 %v1023, %v1022
  %v1034 = vpack.c.b16 %v1025, %v1024
  %v1035 = vpack.c.b16 %v1027, %v1026
  %1044 = vmatpush.bf16.msra.mxu0 %v1035
  %1045 = vmatpush.bf16.msra.mxu0 %v1034
  %1046 = vmatpush.bf16.msra.mxu0 %v1033
  %1047 = vmatpush.bf16.msra.mxu0 %v1032
  %1048 = vmatpush.bf16.msra.mxu0 %v1031
  %1049 = vmatpush.bf16.msra.mxu0 %v1030
  %1050 = vmatpush.bf16.msra.mxu0 %v1029
  %1051 = vmatpush.bf16.msra.mxu0 %v1028
  %1052 = vmatmul.bf16.gmra.mxu0 %v975
  %v1053 = vpop.f32.mrf.mxu0
  %v1054 = vadd.f32 %v994, %v1053
  %v1055 = vpop.f32.mrf.mxu0
  %v1056 = vadd.f32 %v994, %v1055
  %1057 = vdwg.mxu0
  %v1058 = vadd.f32 %v778, %v1054
  %v1059 = vadd.f32 %v779, %v1056
  %v1060 = vld [vmem:[%s35] sm:$0x1]
  %v1061 = vld [vmem:[%s37] sm:$0x1]
  %1062 = vadd.xlane.f32.xlu0 %v1058
  %v1063 = vpop.xlane.xlu0 %1062
  %v1064 = vsel %vm269, %v1059, 0.0
  %1065 = vadd.xlane.f32.xlu0 %v1064
  %v1066 = vpop.xlane.xlu0 %1065
  %v1067 = vmul.f32 %v1063, 0.03125
  %v1068 = vmul.f32 %v1066, 0.03125
  %v1069 = vsub.f32 %v1058, %v1067
  %v1070 = vsub.f32 %v1059, %v1068
  %v1071 = vmul.f32 %v1069, %v1069
  %v1072 = vmul.f32 %v1070, %v1070
  %1073 = vadd.xlane.f32.xlu0 %v1071
  %v1074 = vpop.xlane.xlu0 %1073
  %v1075 = vsel %vm269, %v1072, 0.0
  %1076 = vadd.xlane.f32.xlu0 %v1075
  %v1077 = vpop.xlane.xlu0 %1076
  %v1078 = vmul.f32 %v1067, 96.0
  %v1079 = vmul.f32 %v1068, 96.0
  %v1080 = vmul.f32 %v1078, %v1067
  %v1081 = vmul.f32 %v1079, %v1068
  %v1082 = vsub.f32 %v1074, %v1080
  %v1083 = vsub.f32 %v1077, %v1081
  %v1084 = vmul.f32 %v1082, 0.03125
  %v1085 = vmul.f32 %v1083, 0.03125
  %v1086 = vadd.f32 %v1084, 1e-05
  %v1087 = vadd.f32 %v1085, 1e-05
  %v1088 = vrsqrt.pop %v1086
  %v1089 = vmul.f32 %v1088, %v1086
  %v1090 = vmul.f32 %v1089, %v1088
  %v1091 = vmul.f32 0.5, %v1090
  %v1092 = vsub.f32 1.5, %v1091
  %v1093 = vmul.f32 %v1088, %v1092
  %vm1094 = vweird.f32 %v1086
  %vm1095 = vweird.f32 %v1088
  %vm1096 = vmor %vm1094, %vm1095
  %v1097 = vsel %vm1096, %v1088, %v1093
  %v1098 = vrsqrt.pop %v1087
  %v1099 = vmul.f32 %v1098, %v1087
  %v1100 = vmul.f32 %v1099, %v1098
  %v1101 = vmul.f32 0.5, %v1100
  %v1102 = vsub.f32 1.5, %v1101
  %v1103 = vmul.f32 %v1098, %v1102
  %vm1104 = vweird.f32 %v1087
  %vm1105 = vweird.f32 %v1098
  %vm1106 = vmor %vm1104, %vm1105
  %v1107 = vsel %vm1106, %v1098, %v1103
  %v1108 = vmul.f32 %v1069, %v1097
  %v1109 = vmul.f32 %v1070, %v1107
  %v1111 = vperm.slane %v1060, 0
  %v1113 = vmul.f32 %v1108, %v1111
  %v1114 = vmul.f32 %v1109, %v1111
  %v1116 = vperm.slane %v1061, 0
  %v1118 = vadd.f32 %v1113, %v1116
  %v1119 = vadd.f32 %v1114, %v1116
  %v1120 = vpack.c.bf16 %v1119, %v1118
  %v1121 = vld [vmem:[%s39] sm:$0xf]
  %v1122 = vld [vmem:[%s39 + $0x4] sm:$0xf]
  %v1123 = vld [vmem:[%s39 + $0x8] sm:$0xf]
  %v1124 = vld [vmem:[%s39 + $0xc] sm:$0xf]
  %v1125 = vld [vmem:[%s39 + $0x10] sm:$0xf]
  %v1126 = vld [vmem:[%s39 + $0x14] sm:$0xf]
  %v1127 = vld [vmem:[%s39 + $0x18] sm:$0xf]
  %v1128 = vld [vmem:[%s39 + $0x1c] sm:$0xf]
  %v1129 = vld [vmem:[%s39 + $0x20] sm:$0xf]
  %v1130 = vld [vmem:[%s39 + $0x24] sm:$0xf]
  %v1131 = vld [vmem:[%s39 + $0x28] sm:$0xf]
  %v1132 = vld [vmem:[%s39 + $0x2c] sm:$0xf]
  %v1133 = vld [vmem:[%s39 + $0x30] sm:$0xf]
  %v1134 = vld [vmem:[%s39 + $0x34] sm:$0xf]
  %v1135 = vld [vmem:[%s39 + $0x38] sm:$0xf]
  %v1136 = vld [vmem:[%s39 + $0x3c] sm:$0xf]
  %v1153 = vunpack.c.l.b16 %v1121
  %v1154 = vunpack.c.l.b16 %v1122
  %v1155 = vunpack.c.l.b16 %v1123
  %v1156 = vunpack.c.l.b16 %v1124
  %v1157 = vunpack.c.l.b16 %v1125
  %v1158 = vunpack.c.l.b16 %v1126
  %v1159 = vunpack.c.l.b16 %v1127
  %v1160 = vunpack.c.l.b16 %v1128
  %v1161 = vunpack.c.l.b16 %v1129
  %v1162 = vunpack.c.l.b16 %v1130
  %v1163 = vunpack.c.l.b16 %v1131
  %v1164 = vunpack.c.l.b16 %v1132
  %v1165 = vunpack.c.l.b16 %v1133
  %v1166 = vunpack.c.l.b16 %v1134
  %v1167 = vunpack.c.l.b16 %v1135
  %v1168 = vunpack.c.l.b16 %v1136
  %v1169 = vpack.c.b16 %v1154, %v1153
  %v1170 = vpack.c.b16 %v1156, %v1155
  %v1171 = vpack.c.b16 %v1158, %v1157
  %v1172 = vpack.c.b16 %v1160, %v1159
  %v1173 = vpack.c.b16 %v1162, %v1161
  %v1174 = vpack.c.b16 %v1164, %v1163
  %v1175 = vpack.c.b16 %v1166, %v1165
  %v1176 = vpack.c.b16 %v1168, %v1167
  %1185 = vmatpush.bf16.msra.mxu0 %v1176
  %1186 = vmatpush.bf16.msra.mxu0 %v1175
  %1187 = vmatpush.bf16.msra.mxu0 %v1174
  %1188 = vmatpush.bf16.msra.mxu0 %v1173
  %1189 = vmatpush.bf16.msra.mxu0 %v1172
  %1190 = vmatpush.bf16.msra.mxu0 %v1171
  %1191 = vmatpush.bf16.msra.mxu0 %v1170
  %1192 = vmatpush.bf16.msra.mxu0 %v1169
  %1193 = vmatmul.bf16.gmra.mxu0 %v1120
  %v1194 = vpop.f32.mrf.mxu0
  %v1195 = vadd.f32 0.0, %v1194
  %v1196 = vpop.f32.mrf.mxu0
  %v1197 = vadd.f32 0.0, %v1196
  %1198 = vdwg.mxu0
  %v1199 = vld [vmem:[%s41] sm:$0x1]
  %v1201 = vperm.slane %v1199, 0
  %v1203 = vadd.f32 %v1195, %v1201
  %v1204 = vadd.f32 %v1197, %v1201
  %v1205 = vmul.f32 %v1203, 0.35355338
  %v1206 = vmul.f32 %v1204, 0.35355338
  %v1207 = vld [vmem:[%s43] sm:$0x1]
  %v1209 = vperm.slane %v1207, 0
  %1210 = vrot.lane.b32.xlu0 %v1209, 64
  %v1211 = vpop.permute.xlu0 %1210
  %v1213 = vadd.f32 %v1195, %v1211
  %v1214 = vadd.f32 %v1197, %v1211
  %v1215 = vpack.c.bf16 %v1206, %v1205
  %v1216 = vpack.c.bf16 %v1197, %v1195
  %1218 = vrot.lane.b32.xlu0 %v1216, 96
  %v1219 = vpop.permute.xlu0 %1218
  %v1221 = vsel %vm426, %v1215, 0
  %v1224 = vsel %vm426, %v1219, 0
  %1226 = vmatpush.bf16.xpose.msra.mxu0 0
  %1227 = vmatpush.bf16.xpose.msra.mxu0 0
  %1228 = vmatpush.bf16.xpose.msra.mxu0 0
  %1229 = vmatpush.bf16.xpose.msra.mxu0 0
  %1230 = vmatpush.bf16.xpose.msra.mxu0 0
  %1231 = vmatpush.bf16.xpose.msra.mxu0 0
  %1232 = vmatpush.bf16.xpose.msra.mxu0 0
  %1233 = vmatpush.bf16.xpose.msra.mxu0 %v1224
  %1234 = vmatmul.bf16.gmra.mxu0 %v1221
  %v1235 = vpop.f32.mrf.mxu0
  %v1236 = vadd.f32 %v263, %v1235
  %v1237 = vpop.f32.mrf.mxu0
  %v1238 = vadd.f32 %v264, %v1237
  %1239 = vdwg.mxu0
  %v1240 = vsel %vm447, %v1236, -inf
  %1241 = vmax.xlane.f32.xlu0 %v1240
  %v1242 = vpop.xlane.xlu0 %1241
  %v1243 = vsel %vm451, %v1238, -inf
  %1244 = vmax.xlane.f32.xlu0 %v1243
  %v1245 = vpop.xlane.xlu0 %1244
  %v1246 = vsub.f32 %v1236, %v1242
  %v1247 = vsub.f32 %v1238, %v1245
  %v1248 = vmul.f32 %v1246, 1.442695
  %v1249 = vpow.pop %v1248
  %v1250 = vmul.f32 %v1247, 1.442695
  %v1251 = vpow.pop %v1250
  %v1252 = vsel %vm447, %v1249, 0.0
  %1253 = vadd.xlane.f32.xlu0 %v1252
  %v1254 = vpop.xlane.xlu0 %1253
  %v1255 = vsel %vm451, %v1251, 0.0
  %1256 = vadd.xlane.f32.xlu0 %v1255
  %v1257 = vpop.xlane.xlu0 %1256
  %v1258 = vrcp.pop %v1254
  %v1259 = vrcp.pop %v1257
  %v1260 = vmul.f32 %v1249, %v1258
  %v1261 = vmul.f32 %v1251, %v1259
  %v1262 = vpack.c.bf16 %v1261, %v1260
  %v1263 = vpack.c.bf16 %v1214, %v1213
  %1265 = vrot.lane.b32.xlu0 %v1263, 64
  %v1266 = vpop.permute.xlu0 %1265
  %v1268 = vsel %vm447, %v1262, 0
  %v1271 = vsel %vm479, %v1266, 0
  %1273 = vmatpush.bf16.msra.mxu0 0
  %1274 = vmatpush.bf16.msra.mxu0 0
  %1275 = vmatpush.bf16.msra.mxu0 0
  %1276 = vmatpush.bf16.msra.mxu0 0
  %1277 = vmatpush.bf16.msra.mxu0 0
  %1278 = vmatpush.bf16.msra.mxu0 0
  %1279 = vmatpush.bf16.msra.mxu0 0
  %1280 = vmatpush.bf16.msra.mxu0 %v1271
  %1281 = vmatmul.bf16.gmra.mxu0 %v1268
  %v1282 = vpop.f32.mrf.mxu0
  %v1283 = vadd.f32 0.0, %v1282
  %v1284 = vpop.f32.mrf.mxu0
  %v1285 = vadd.f32 0.0, %v1284
  %1286 = vdwg.mxu0
  %1288 = vrot.lane.b32.xlu0 %v1215, 120
  %v1289 = vpop.permute.xlu0 %1288
  %1290 = vrot.lane.b32.xlu0 %v1216, 88
  %v1291 = vpop.permute.xlu0 %1290
  %v1293 = vsel %vm426, %v1289, 0
  %v1296 = vsel %vm426, %v1291, 0
  %1298 = vmatpush.bf16.xpose.msra.mxu0 0
  %1299 = vmatpush.bf16.xpose.msra.mxu0 0
  %1300 = vmatpush.bf16.xpose.msra.mxu0 0
  %1301 = vmatpush.bf16.xpose.msra.mxu0 0
  %1302 = vmatpush.bf16.xpose.msra.mxu0 0
  %1303 = vmatpush.bf16.xpose.msra.mxu0 0
  %1304 = vmatpush.bf16.xpose.msra.mxu0 0
  %1305 = vmatpush.bf16.xpose.msra.mxu0 %v1296
  %1306 = vmatmul.bf16.gmra.mxu0 %v1293
  %v1307 = vpop.f32.mrf.mxu0
  %v1308 = vadd.f32 %v263, %v1307
  %v1309 = vpop.f32.mrf.mxu0
  %v1310 = vadd.f32 %v264, %v1309
  %1311 = vdwg.mxu0
  %v1312 = vsel %vm447, %v1308, -inf
  %1313 = vmax.xlane.f32.xlu0 %v1312
  %v1314 = vpop.xlane.xlu0 %1313
  %v1315 = vsel %vm451, %v1310, -inf
  %1316 = vmax.xlane.f32.xlu0 %v1315
  %v1317 = vpop.xlane.xlu0 %1316
  %v1318 = vsub.f32 %v1308, %v1314
  %v1319 = vsub.f32 %v1310, %v1317
  %v1320 = vmul.f32 %v1318, 1.442695
  %v1321 = vpow.pop %v1320
  %v1322 = vmul.f32 %v1319, 1.442695
  %v1323 = vpow.pop %v1322
  %v1324 = vsel %vm447, %v1321, 0.0
  %1325 = vadd.xlane.f32.xlu0 %v1324
  %v1326 = vpop.xlane.xlu0 %1325
  %v1327 = vsel %vm451, %v1323, 0.0
  %1328 = vadd.xlane.f32.xlu0 %v1327
  %v1329 = vpop.xlane.xlu0 %1328
  %v1330 = vrcp.pop %v1326
  %v1331 = vrcp.pop %v1329
  %v1332 = vmul.f32 %v1321, %v1330
  %v1333 = vmul.f32 %v1323, %v1331
  %v1334 = vpack.c.bf16 %v1333, %v1332
  %1335 = vrot.lane.b32.xlu0 %v1263, 56
  %v1336 = vpop.permute.xlu0 %1335
  %v1338 = vsel %vm447, %v1334, 0
  %v1341 = vsel %vm479, %v1336, 0
  %1343 = vmatpush.bf16.msra.mxu0 0
  %1344 = vmatpush.bf16.msra.mxu0 0
  %1345 = vmatpush.bf16.msra.mxu0 0
  %1346 = vmatpush.bf16.msra.mxu0 0
  %1347 = vmatpush.bf16.msra.mxu0 0
  %1348 = vmatpush.bf16.msra.mxu0 0
  %1349 = vmatpush.bf16.msra.mxu0 0
  %1350 = vmatpush.bf16.msra.mxu0 %v1341
  %1351 = vmatmul.bf16.gmra.mxu0 %v1338
  %v1352 = vpop.f32.mrf.mxu0
  %v1353 = vadd.f32 0.0, %v1352
  %v1354 = vpop.f32.mrf.mxu0
  %v1355 = vadd.f32 0.0, %v1354
  %1356 = vdwg.mxu0
  %1357 = vrot.lane.b32.xlu0 %v1215, 112
  %v1358 = vpop.permute.xlu0 %1357
  %1359 = vrot.lane.b32.xlu0 %v1216, 80
  %v1360 = vpop.permute.xlu0 %1359
  %v1362 = vsel %vm426, %v1358, 0
  %v1365 = vsel %vm426, %v1360, 0
  %1367 = vmatpush.bf16.xpose.msra.mxu0 0
  %1368 = vmatpush.bf16.xpose.msra.mxu0 0
  %1369 = vmatpush.bf16.xpose.msra.mxu0 0
  %1370 = vmatpush.bf16.xpose.msra.mxu0 0
  %1371 = vmatpush.bf16.xpose.msra.mxu0 0
  %1372 = vmatpush.bf16.xpose.msra.mxu0 0
  %1373 = vmatpush.bf16.xpose.msra.mxu0 0
  %1374 = vmatpush.bf16.xpose.msra.mxu0 %v1365
  %1375 = vmatmul.bf16.gmra.mxu0 %v1362
  %v1376 = vpop.f32.mrf.mxu0
  %v1377 = vadd.f32 %v263, %v1376
  %v1378 = vpop.f32.mrf.mxu0
  %v1379 = vadd.f32 %v264, %v1378
  %1380 = vdwg.mxu0
  %v1381 = vsel %vm447, %v1377, -inf
  %1382 = vmax.xlane.f32.xlu0 %v1381
  %v1383 = vpop.xlane.xlu0 %1382
  %v1384 = vsel %vm451, %v1379, -inf
  %1385 = vmax.xlane.f32.xlu0 %v1384
  %v1386 = vpop.xlane.xlu0 %1385
  %v1387 = vsub.f32 %v1377, %v1383
  %v1388 = vsub.f32 %v1379, %v1386
  %v1389 = vmul.f32 %v1387, 1.442695
  %v1390 = vpow.pop %v1389
  %v1391 = vmul.f32 %v1388, 1.442695
  %v1392 = vpow.pop %v1391
  %v1393 = vsel %vm447, %v1390, 0.0
  %1394 = vadd.xlane.f32.xlu0 %v1393
  %v1395 = vpop.xlane.xlu0 %1394
  %v1396 = vsel %vm451, %v1392, 0.0
  %1397 = vadd.xlane.f32.xlu0 %v1396
  %v1398 = vpop.xlane.xlu0 %1397
  %v1399 = vrcp.pop %v1395
  %v1400 = vrcp.pop %v1398
  %v1401 = vmul.f32 %v1390, %v1399
  %v1402 = vmul.f32 %v1392, %v1400
  %v1403 = vpack.c.bf16 %v1402, %v1401
  %1404 = vrot.lane.b32.xlu0 %v1263, 48
  %v1405 = vpop.permute.xlu0 %1404
  %v1407 = vsel %vm447, %v1403, 0
  %v1410 = vsel %vm479, %v1405, 0
  %1412 = vmatpush.bf16.msra.mxu0 0
  %1413 = vmatpush.bf16.msra.mxu0 0
  %1414 = vmatpush.bf16.msra.mxu0 0
  %1415 = vmatpush.bf16.msra.mxu0 0
  %1416 = vmatpush.bf16.msra.mxu0 0
  %1417 = vmatpush.bf16.msra.mxu0 0
  %1418 = vmatpush.bf16.msra.mxu0 0
  %1419 = vmatpush.bf16.msra.mxu0 %v1410
  %1420 = vmatmul.bf16.gmra.mxu0 %v1407
  %v1421 = vpop.f32.mrf.mxu0
  %v1422 = vadd.f32 0.0, %v1421
  %v1423 = vpop.f32.mrf.mxu0
  %v1424 = vadd.f32 0.0, %v1423
  %1425 = vdwg.mxu0
  %1426 = vrot.lane.b32.xlu0 %v1215, 104
  %v1427 = vpop.permute.xlu0 %1426
  %1428 = vrot.lane.b32.xlu0 %v1216, 72
  %v1429 = vpop.permute.xlu0 %1428
  %v1431 = vsel %vm426, %v1427, 0
  %v1434 = vsel %vm426, %v1429, 0
  %1436 = vmatpush.bf16.xpose.msra.mxu0 0
  %1437 = vmatpush.bf16.xpose.msra.mxu0 0
  %1438 = vmatpush.bf16.xpose.msra.mxu0 0
  %1439 = vmatpush.bf16.xpose.msra.mxu0 0
  %1440 = vmatpush.bf16.xpose.msra.mxu0 0
  %1441 = vmatpush.bf16.xpose.msra.mxu0 0
  %1442 = vmatpush.bf16.xpose.msra.mxu0 0
  %1443 = vmatpush.bf16.xpose.msra.mxu0 %v1434
  %1444 = vmatmul.bf16.gmra.mxu0 %v1431
  %v1445 = vpop.f32.mrf.mxu0
  %v1446 = vadd.f32 %v263, %v1445
  %v1447 = vpop.f32.mrf.mxu0
  %v1448 = vadd.f32 %v264, %v1447
  %1449 = vdwg.mxu0
  %v1450 = vsel %vm447, %v1446, -inf
  %1451 = vmax.xlane.f32.xlu0 %v1450
  %v1452 = vpop.xlane.xlu0 %1451
  %v1453 = vsel %vm451, %v1448, -inf
  %1454 = vmax.xlane.f32.xlu0 %v1453
  %v1455 = vpop.xlane.xlu0 %1454
  %v1456 = vsub.f32 %v1446, %v1452
  %v1457 = vsub.f32 %v1448, %v1455
  %v1458 = vmul.f32 %v1456, 1.442695
  %v1459 = vpow.pop %v1458
  %v1460 = vmul.f32 %v1457, 1.442695
  %v1461 = vpow.pop %v1460
  %v1462 = vsel %vm447, %v1459, 0.0
  %1463 = vadd.xlane.f32.xlu0 %v1462
  %v1464 = vpop.xlane.xlu0 %1463
  %v1465 = vsel %vm451, %v1461, 0.0
  %1466 = vadd.xlane.f32.xlu0 %v1465
  %v1467 = vpop.xlane.xlu0 %1466
  %v1468 = vrcp.pop %v1464
  %v1469 = vrcp.pop %v1467
  %v1470 = vmul.f32 %v1459, %v1468
  %v1471 = vmul.f32 %v1461, %v1469
  %v1472 = vpack.c.bf16 %v1471, %v1470
  %1473 = vrot.lane.b32.xlu0 %v1263, 40
  %v1474 = vpop.permute.xlu0 %1473
  %v1476 = vsel %vm447, %v1472, 0
  %v1479 = vsel %vm479, %v1474, 0
  %1481 = vmatpush.bf16.msra.mxu0 0
  %1482 = vmatpush.bf16.msra.mxu0 0
  %1483 = vmatpush.bf16.msra.mxu0 0
  %1484 = vmatpush.bf16.msra.mxu0 0
  %1485 = vmatpush.bf16.msra.mxu0 0
  %1486 = vmatpush.bf16.msra.mxu0 0
  %1487 = vmatpush.bf16.msra.mxu0 0
  %1488 = vmatpush.bf16.msra.mxu0 %v1479
  %1489 = vmatmul.bf16.gmra.mxu0 %v1476
  %v1490 = vpop.f32.mrf.mxu0
  %v1491 = vadd.f32 0.0, %v1490
  %v1492 = vpop.f32.mrf.mxu0
  %v1493 = vadd.f32 0.0, %v1492
  %1494 = vdwg.mxu0
  %1497 = vrot.lane.b32.xlu0 %v1353, 8
  %v1498 = vpop.permute.xlu0 %1497
  %1499 = vrot.lane.b32.xlu0 %v1355, 8
  %v1500 = vpop.permute.xlu0 %1499
  %1505 = vrot.lane.b32.xlu0 %v1422, 16
  %v1506 = vpop.permute.xlu0 %1505
  %1507 = vrot.lane.b32.xlu0 %v1424, 16
  %v1508 = vpop.permute.xlu0 %1507
  %1513 = vrot.lane.b32.xlu0 %v1491, 24
  %v1514 = vpop.permute.xlu0 %1513
  %1515 = vrot.lane.b32.xlu0 %v1493, 24
  %v1516 = vpop.permute.xlu0 %1515
  %v1519 = vsel %vm426, %v1283, %v1498
  %v1520 = vsel %vm426, %v1285, %v1500
  %v1521 = vsel %vm731, %v1519, %v1506
  %v1522 = vsel %vm731, %v1520, %v1508
  %v1523 = vsel %vm734, %v1521, %v1514
  %v1524 = vsel %vm734, %v1522, %v1516
  %v1525 = vpack.c.bf16 %v1524, %v1523
  %v1526 = vld [vmem:[%s45] sm:$0xf]
  %v1527 = vld [vmem:[%s45 + $0x4] sm:$0xf]
  %v1528 = vld [vmem:[%s45 + $0x8] sm:$0xf]
  %v1529 = vld [vmem:[%s45 + $0xc] sm:$0xf]
  %v1534 = vunpack.c.l.b16 %v1526
  %v1535 = vunpack.c.l.b16 %v1527
  %v1536 = vunpack.c.l.b16 %v1528
  %v1537 = vunpack.c.l.b16 %v1529
  %v1538 = vpack.c.b16 %v1535, %v1534
  %v1539 = vpack.c.b16 %v1537, %v1536
  %v1543 = vsel %vm754, %v1525, 0
  %1545 = vmatpush.bf16.msra.mxu0 0
  %1546 = vmatpush.bf16.msra.mxu0 0
  %1547 = vmatpush.bf16.msra.mxu0 0
  %1548 = vmatpush.bf16.msra.mxu0 0
  %1549 = vmatpush.bf16.msra.mxu0 0
  %1550 = vmatpush.bf16.msra.mxu0 0
  %1551 = vmatpush.bf16.msra.mxu0 %v1539
  %1552 = vmatpush.bf16.msra.mxu0 %v1538
  %1553 = vmatmul.bf16.gmra.mxu0 %v1543
  %v1554 = vpop.f32.mrf.mxu0
  %v1555 = vadd.f32 0.0, %v1554
  %v1556 = vpop.f32.mrf.mxu0
  %v1557 = vadd.f32 0.0, %v1556
  %1558 = vdwg.mxu0
  %v1559 = vadd.f32 %v1058, %v1555
  %v1560 = vadd.f32 %v1059, %v1557
  %v1561 = vld [vmem:[%s47] sm:$0x1]
  %v1563 = vperm.slane %v1561, 0
  %v1565 = vadd.f32 %v1559, %v1563
  %v1566 = vadd.f32 %v1560, %v1563
  %v1567 = vld [vmem:[%s49] sm:$0x1]
  %v1568 = vld [vmem:[%s51] sm:$0x1]
  %1569 = vadd.xlane.f32.xlu0 %v1565
  %v1570 = vpop.xlane.xlu0 %1569
  %v1571 = vsel %vm269, %v1566, 0.0
  %1572 = vadd.xlane.f32.xlu0 %v1571
  %v1573 = vpop.xlane.xlu0 %1572
  %v1574 = vmul.f32 %v1570, 0.03125
  %v1575 = vmul.f32 %v1573, 0.03125
  %v1576 = vsub.f32 %v1565, %v1574
  %v1577 = vsub.f32 %v1566, %v1575
  %v1578 = vmul.f32 %v1576, %v1576
  %v1579 = vmul.f32 %v1577, %v1577
  %1580 = vadd.xlane.f32.xlu0 %v1578
  %v1581 = vpop.xlane.xlu0 %1580
  %v1582 = vsel %vm269, %v1579, 0.0
  %1583 = vadd.xlane.f32.xlu0 %v1582
  %v1584 = vpop.xlane.xlu0 %1583
  %v1585 = vmul.f32 %v1574, 96.0
  %v1586 = vmul.f32 %v1575, 96.0
  %v1587 = vmul.f32 %v1585, %v1574
  %v1588 = vmul.f32 %v1586, %v1575
  %v1589 = vsub.f32 %v1581, %v1587
  %v1590 = vsub.f32 %v1584, %v1588
  %v1591 = vmul.f32 %v1589, 0.03125
  %v1592 = vmul.f32 %v1590, 0.03125
  %v1593 = vadd.f32 %v1591, 1e-05
  %v1594 = vadd.f32 %v1592, 1e-05
  %v1595 = vrsqrt.pop %v1593
  %v1596 = vmul.f32 %v1595, %v1593
  %v1597 = vmul.f32 %v1596, %v1595
  %v1598 = vmul.f32 0.5, %v1597
  %v1599 = vsub.f32 1.5, %v1598
  %v1600 = vmul.f32 %v1595, %v1599
  %vm1601 = vweird.f32 %v1593
  %vm1602 = vweird.f32 %v1595
  %vm1603 = vmor %vm1601, %vm1602
  %v1604 = vsel %vm1603, %v1595, %v1600
  %v1605 = vrsqrt.pop %v1594
  %v1606 = vmul.f32 %v1605, %v1594
  %v1607 = vmul.f32 %v1606, %v1605
  %v1608 = vmul.f32 0.5, %v1607
  %v1609 = vsub.f32 1.5, %v1608
  %v1610 = vmul.f32 %v1605, %v1609
  %vm1611 = vweird.f32 %v1594
  %vm1612 = vweird.f32 %v1605
  %vm1613 = vmor %vm1611, %vm1612
  %v1614 = vsel %vm1613, %v1605, %v1610
  %v1615 = vmul.f32 %v1576, %v1604
  %v1616 = vmul.f32 %v1577, %v1614
  %v1618 = vperm.slane %v1567, 0
  %v1620 = vmul.f32 %v1615, %v1618
  %v1621 = vmul.f32 %v1616, %v1618
  %v1623 = vperm.slane %v1568, 0
  %v1625 = vadd.f32 %v1620, %v1623
  %v1626 = vadd.f32 %v1621, %v1623
  %v1627 = vpack.c.bf16 %v1626, %v1625
  %v1628 = vld [vmem:[%s53] sm:$0xf]
  %v1629 = vld [vmem:[%s53 + $0x4] sm:$0xf]
  %v1630 = vld [vmem:[%s53 + $0x8] sm:$0xf]
  %v1631 = vld [vmem:[%s53 + $0xc] sm:$0xf]
  %v1632 = vld [vmem:[%s53 + $0x10] sm:$0xf]
  %v1633 = vld [vmem:[%s53 + $0x14] sm:$0xf]
  %v1634 = vld [vmem:[%s53 + $0x18] sm:$0xf]
  %v1635 = vld [vmem:[%s53 + $0x1c] sm:$0xf]
  %v1636 = vld [vmem:[%s53 + $0x20] sm:$0xf]
  %v1637 = vld [vmem:[%s53 + $0x24] sm:$0xf]
  %v1638 = vld [vmem:[%s53 + $0x28] sm:$0xf]
  %v1639 = vld [vmem:[%s53 + $0x2c] sm:$0xf]
  %v1640 = vld [vmem:[%s53 + $0x30] sm:$0xf]
  %v1641 = vld [vmem:[%s53 + $0x34] sm:$0xf]
  %v1642 = vld [vmem:[%s53 + $0x38] sm:$0xf]
  %v1643 = vld [vmem:[%s53 + $0x3c] sm:$0xf]
  %v1644 = vld [vmem:[%s55] sm:$0x1]
  %v1646 = vperm.slane %v1644, 0
  %v1664 = vunpack.c.l.b16 %v1628
  %v1665 = vunpack.c.l.b16 %v1629
  %v1666 = vunpack.c.l.b16 %v1630
  %v1667 = vunpack.c.l.b16 %v1631
  %v1668 = vunpack.c.l.b16 %v1632
  %v1669 = vunpack.c.l.b16 %v1633
  %v1670 = vunpack.c.l.b16 %v1634
  %v1671 = vunpack.c.l.b16 %v1635
  %v1672 = vunpack.c.l.b16 %v1636
  %v1673 = vunpack.c.l.b16 %v1637
  %v1674 = vunpack.c.l.b16 %v1638
  %v1675 = vunpack.c.l.b16 %v1639
  %v1676 = vunpack.c.l.b16 %v1640
  %v1677 = vunpack.c.l.b16 %v1641
  %v1678 = vunpack.c.l.b16 %v1642
  %v1679 = vunpack.c.l.b16 %v1643
  %v1680 = vpack.c.b16 %v1665, %v1664
  %v1681 = vpack.c.b16 %v1667, %v1666
  %v1682 = vpack.c.b16 %v1669, %v1668
  %v1683 = vpack.c.b16 %v1671, %v1670
  %v1684 = vpack.c.b16 %v1673, %v1672
  %v1685 = vpack.c.b16 %v1675, %v1674
  %v1686 = vpack.c.b16 %v1677, %v1676
  %v1687 = vpack.c.b16 %v1679, %v1678
  %1696 = vmatpush.bf16.msra.mxu0 %v1687
  %1697 = vmatpush.bf16.msra.mxu0 %v1686
  %1698 = vmatpush.bf16.msra.mxu0 %v1685
  %1699 = vmatpush.bf16.msra.mxu0 %v1684
  %1700 = vmatpush.bf16.msra.mxu0 %v1683
  %1701 = vmatpush.bf16.msra.mxu0 %v1682
  %1702 = vmatpush.bf16.msra.mxu0 %v1681
  %1703 = vmatpush.bf16.msra.mxu0 %v1680
  %1704 = vmatmul.bf16.gmra.mxu0 %v1627
  %v1705 = vpop.f32.mrf.mxu0
  %v1706 = vadd.f32 %v1646, %v1705
  %v1707 = vpop.f32.mrf.mxu0
  %v1708 = vadd.f32 %v1646, %v1707
  %1709 = vdwg.mxu0
  %v1710 = vmul.f32 %v1706, 0.5
  %v1711 = vmul.f32 %v1708, 0.5
  %v1712 = vmul.f32 %v1706, 0.70710677
  %v1713 = vmul.f32 %v1708, 0.70710677
  %vm1714 = vcmp.ge.f32.partialorder %v1712, 0.0
  %vm1715 = vcmp.ge.f32.partialorder %v1713, 0.0
  %v1716 = vsel %vm1714, 1.0, -1.0
  %v1717 = vsel %vm1715, 1.0, -1.0
  %v1718 = vand.u32 2147483647, %v1712
  %v1719 = vand.u32 2147483647, %v1713
  %v1720 = vmul.f32 %v1718, 0.3275911
  %v1721 = vmul.f32 %v1719, 0.3275911
  %v1722 = vadd.f32 %v1720, 1.0
  %v1723 = vadd.f32 %v1721, 1.0
  %v1724 = vrcp.pop %v1722
  %v1725 = vrcp.pop %v1723
  %v1726 = vmul.f32 %v1724, 1.0614054
  %v1727 = vmul.f32 %v1725, 1.0614054
  %v1728 = vadd.f32 %v1726, -1.4531521
  %v1729 = vadd.f32 %v1727, -1.4531521
  %v1730 = vmul.f32 %v1728, %v1724
  %v1731 = vmul.f32 %v1729, %v1725
  %v1732 = vadd.f32 %v1730, 1.4214138
  %v1733 = vadd.f32 %v1731, 1.4214138
  %v1734 = vmul.f32 %v1732, %v1724
  %v1735 = vmul.f32 %v1733, %v1725
  %v1736 = vadd.f32 %v1734, -0.28449672
  %v1737 = vadd.f32 %v1735, -0.28449672
  %v1738 = vmul.f32 %v1736, %v1724
  %v1739 = vmul.f32 %v1737, %v1725
  %v1740 = vadd.f32 %v1738, 0.2548296
  %v1741 = vadd.f32 %v1739, 0.2548296
  %v1742 = vmul.f32 %v1740, %v1724
  %v1743 = vmul.f32 %v1741, %v1725
  %v1744 = vsub.f32 0.0, %v1718
  %v1745 = vsub.f32 0.0, %v1719
  %v1746 = vmul.f32 %v1744, %v1718
  %v1747 = vmul.f32 %v1745, %v1719
  %v1748 = vmul.f32 %v1746, 1.442695
  %v1749 = vpow.pop %v1748
  %v1750 = vmul.f32 %v1747, 1.442695
  %v1751 = vpow.pop %v1750
  %v1752 = vmul.f32 %v1742, %v1749
  %v1753 = vmul.f32 %v1743, %v1751
  %v1754 = vsub.f32 1.0, %v1752
  %v1755 = vsub.f32 1.0, %v1753
  %v1756 = vmul.f32 %v1716, %v1754
  %v1757 = vmul.f32 %v1717, %v1755
  %v1758 = vadd.f32 %v1756, 1.0
  %v1759 = vadd.f32 %v1757, 1.0
  %v1760 = vmul.f32 %v1710, %v1758
  %v1761 = vmul.f32 %v1711, %v1759
  %v1762 = vpack.c.bf16 %v1761, %v1760
  %v1763 = vld [vmem:[%s57] sm:$0xf]
  %v1764 = vld [vmem:[%s57 + $0x4] sm:$0xf]
  %v1765 = vld [vmem:[%s57 + $0x8] sm:$0xf]
  %v1766 = vld [vmem:[%s57 + $0xc] sm:$0xf]
  %v1767 = vld [vmem:[%s57 + $0x10] sm:$0xf]
  %v1768 = vld [vmem:[%s57 + $0x14] sm:$0xf]
  %v1769 = vld [vmem:[%s57 + $0x18] sm:$0xf]
  %v1770 = vld [vmem:[%s57 + $0x1c] sm:$0xf]
  %v1771 = vld [vmem:[%s57 + $0x20] sm:$0xf]
  %v1772 = vld [vmem:[%s57 + $0x24] sm:$0xf]
  %v1773 = vld [vmem:[%s57 + $0x28] sm:$0xf]
  %v1774 = vld [vmem:[%s57 + $0x2c] sm:$0xf]
  %v1775 = vld [vmem:[%s57 + $0x30] sm:$0xf]
  %v1776 = vld [vmem:[%s57 + $0x34] sm:$0xf]
  %v1777 = vld [vmem:[%s57 + $0x38] sm:$0xf]
  %v1778 = vld [vmem:[%s57 + $0x3c] sm:$0xf]
  %v1779 = vld [vmem:[%s59] sm:$0x1]
  %v1781 = vperm.slane %v1779, 0
  %v1799 = vunpack.c.l.b16 %v1763
  %v1800 = vunpack.c.l.b16 %v1764
  %v1801 = vunpack.c.l.b16 %v1765
  %v1802 = vunpack.c.l.b16 %v1766
  %v1803 = vunpack.c.l.b16 %v1767
  %v1804 = vunpack.c.l.b16 %v1768
  %v1805 = vunpack.c.l.b16 %v1769
  %v1806 = vunpack.c.l.b16 %v1770
  %v1807 = vunpack.c.l.b16 %v1771
  %v1808 = vunpack.c.l.b16 %v1772
  %v1809 = vunpack.c.l.b16 %v1773
  %v1810 = vunpack.c.l.b16 %v1774
  %v1811 = vunpack.c.l.b16 %v1775
  %v1812 = vunpack.c.l.b16 %v1776
  %v1813 = vunpack.c.l.b16 %v1777
  %v1814 = vunpack.c.l.b16 %v1778
  %v1815 = vpack.c.b16 %v1800, %v1799
  %v1816 = vpack.c.b16 %v1802, %v1801
  %v1817 = vpack.c.b16 %v1804, %v1803
  %v1818 = vpack.c.b16 %v1806, %v1805
  %v1819 = vpack.c.b16 %v1808, %v1807
  %v1820 = vpack.c.b16 %v1810, %v1809
  %v1821 = vpack.c.b16 %v1812, %v1811
  %v1822 = vpack.c.b16 %v1814, %v1813
  %1831 = vmatpush.bf16.msra.mxu0 %v1822
  %1832 = vmatpush.bf16.msra.mxu0 %v1821
  %1833 = vmatpush.bf16.msra.mxu0 %v1820
  %1834 = vmatpush.bf16.msra.mxu0 %v1819
  %1835 = vmatpush.bf16.msra.mxu0 %v1818
  %1836 = vmatpush.bf16.msra.mxu0 %v1817
  %1837 = vmatpush.bf16.msra.mxu0 %v1816
  %1838 = vmatpush.bf16.msra.mxu0 %v1815
  %1839 = vmatmul.bf16.gmra.mxu0 %v1762
  %v1840 = vpop.f32.mrf.mxu0
  %v1841 = vadd.f32 %v1781, %v1840
  %v1842 = vpop.f32.mrf.mxu0
  %v1843 = vadd.f32 %v1781, %v1842
  %1844 = vdwg.mxu0
  %v1845 = vadd.f32 %v1565, %v1841
  %v1846 = vadd.f32 %v1566, %v1843
  %1847 = vst [vmem:[%s61] sm:$0xff] %v1845
  %1848 = vst [vmem:[%s61 + $0x8] sm:$0x3] %v1846
  // Predicated region
  $region122: #{vit_forward.1} parent=0 // pred_check
    _
  $region123: #{vit_forward.1} parent=0 // pred_check_branch
    %1850 = sbr.rel (0) target = $region125
  $region124: #{vit_forward.1} parent=0 // pred_region
    _
  $region125: #{vit_forward.1} parent=0 // pred_fallthru
    _
  // Predicated region
  $region126: #{vit_forward.1} parent=0 // pred_check
    _
  $region127: #{vit_forward.1} parent=0 // pred_check_branch
    %1852 = sbr.rel (0) target = $region129
  $region128: #{vit_forward.1} parent=0 // pred_region
    _
  $region129: #{vit_forward.1} parent=0 // pred_fallthru
    _

</llo_original>
